<compile_context>
chip_gen: v5e
topology: v5e:2x2
jax: 0.10.0
libtpu: 0.0.40
codegen_flags: <defaults>
</compile_context>

<pallas_src>
import jax
import jax.numpy as jnp
from jax.experimental import pallas as pl
from jax.experimental.pallas import tpu as pltpu

OUT_W = 128  # lane-dense output slab width: [h (H) | log_probs (C) | zero pad]


# ----------------------------------------------------------------------------
# Fused kernel: n_layer GRU layers (wavefront) + Linear(H, C) + log-softmax.
# Input rows and all outputs are batch-major: row index = b * T + t.
# ----------------------------------------------------------------------------
def make_fused_kernel(n_layer, B, T, D, H, C):
    H2, H3, H4 = 2 * H, 3 * H, 4 * H
    n_deep = n_layer - 1

    def kernel(*refs):
        x_ref = refs[0]                                   # (B*T, D) f32, row = b*T + t
        wih0_ref, whh0_ref, beff0_ref, bhn0_ref = refs[1:5]
        deep_refs = refs[5:5 + 2 * n_deep]                # (wcat (2H,4H) bf16, bcat (1,4H) f32) per deep layer
        wc_ref = refs[5 + 2 * n_deep]                     # (H, C) bf16
        bc_ref = refs[6 + 2 * n_deep]                     # (1, C) f32
        out_ref = refs[7 + 2 * n_deep]                    # (B*T, OUT_W) f32
        hbuf = refs[8 + 2 * n_deep]                       # VMEM scratch (B*T, H) f32, batch-major

        f32, bf16 = jnp.float32, jnp.bfloat16

        # ---- layer-0 input projection, hoisted out of the recurrence -----------
        # One wide MXU matmul over all (b, t) rows at once (gate-fused 3H output;
        # bih + bhh_r/bhh_z pre-folded into beff0).  Rows stay batch-major.
        gi0 = (jnp.dot(x_ref[...].astype(bf16), wih0_ref[...],
                       preferred_element_type=f32) + beff0_ref[...])        # (B*T, 3H)

        whh0 = whh0_ref[...]                              # (H, 3H) bf16, stays resident
        bhn0 = jnp.broadcast_to(bhn0_ref[...], (B, H))    # hoisted broadcast of bhh_n
        wcat = [deep_refs[2 * i][...] for i in range(n_deep)]
        bcat = [jnp.broadcast_to(deep_refs[2 * i + 1][...], (B, H4))
                for i in range(n_deep)]                   # hoisted bias broadcasts

        # ---- wavefront recurrence (static unroll, T + n_layer - 1 steps) --------
        h = [jnp.zeros((B, H), f32) for _ in range(n_layer)]
        carry = [None] * n_layer                          # layer-l output from the previous step

        def store_last(t, hval):                          # batch-major rows b*T + t
            for b in range(B):
                hbuf[b * T + t:b * T + t + 1, :] = hval[b:b + 1, :]

        for s in range(T + n_layer - 1):
            new_carry = list(carry)

            # layer 0 at time t = s
            if s < T:
                gi_t = jnp.concatenate(
                    [gi0[b * T + s:b * T + s + 1, :] for b in range(B)], axis=0)   # (B, 3H)
                gh = jnp.dot(h[0].astype(bf16), whh0, preferred_element_type=f32)  # (B, 3H)
                rz = jax.nn.sigmoid(gi_t[:, :H2] + gh[:, :H2])   # r|z in one 2H-wide op
                r, z = rz[:, :H], rz[:, H:]
                n = jnp.tanh(gi_t[:, H2:] + r * (gh[:, H2:] + bhn0))
                h[0] = (1.0 - z) * n + z * h[0]
                new_carry[0] = h[0]
                if n_layer == 1:
                    store_last(s, h[0])

            # layer l >= 1 at time t = s - l, fed by layer l-1's previous-step output
            for l in range(1, n_layer):
                t_l = s - l
                if 0 <= t_l < T:
                    cat = jnp.concatenate([carry[l - 1], h[l]], axis=-1).astype(bf16)  # (B, 2H)
                    g = (jnp.dot(cat, wcat[l - 1], preferred_element_type=f32)
                         + bcat[l - 1])                                   # (B, 4H)
                    rz = jax.nn.sigmoid(g[:, :H2])
                    r, z = rz[:, :H], rz[:, H:]
                    n = jnp.tanh(g[:, H2:H3] + r * g[:, H3:])
                    h[l] = (1.0 - z) * n + z * h[l]
                    new_carry[l] = h[l]
                    if l == n_layer - 1:
                        store_last(t_l, h[l])

            carry = new_carry

        # ---- classifier + log-softmax on the batch-major slab -------------------
        h_bm = hbuf[...]                                  # (B*T, H), row = b*T + t
        logits = (jnp.dot(h_bm.astype(bf16), wc_ref[...], preferred_element_type=f32)
                  + bc_ref[...])                          # (B*T, C)
        m = jnp.max(logits, axis=-1, keepdims=True)
        sh = logits - m
        logp = sh - jnp.log(jnp.sum(jnp.exp(sh), axis=-1, keepdims=True))

        # Single lane-dense (B*T, 128) output buffer -> one dense write-back DMA.
        out_ref[:, :H] = h_bm
        out_ref[:, H:H + C] = logp
        out_ref[:, H + C:] = jnp.zeros((B * T, OUT_W - H - C), f32)

    return kernel


def fused_gru_classifier(x, layer0_params, deep_params, w_c, b_c):
    """x: (B, T, D) batch_first f32.
    layer0_params: (wih0 (D,3H) bf16, whh0 (H,3H) bf16, b_eff0 (1,3H) f32, bhn0 (1,H) f32)
    deep_params:   tuple of (wcat (2H,4H) bf16, bcat (1,4H) f32) per layer >= 1.
    Returns (output (B,T,H) f32, log_probs (B*T,C) f32), already in PyTorch order."""
    B, T, D = x.shape
    H = layer0_params[1].shape[0]
    C = w_c.shape[1]
    n_layer = 1 + len(deep_params)

    # Contiguous (free) flatten: row = b*T + t.  No transposes anywhere.
    x2d = x.reshape(B * T, D)

    args = [x2d, *layer0_params]
    for p in deep_params:
        args.extend(p)
    args += [w_c, b_c]

    # Advisory cost estimate so XLA schedules RNG/sampling around the custom call.
    flops = (2 * B * T * D * 3 * H                        # hoisted layer-0 input projection
             + 2 * B * T * H * 3 * H                      # layer-0 recurrence
             + 2 * B * T * 2 * H * 4 * H * (n_layer - 1)  # fused deep-layer matmuls
             + 2 * B * T * H * C)                         # classifier
    transcendentals = 3 * B * H * T * n_layer + 2 * B * T * C
    bytes_accessed = (sum(int(a.size) * a.dtype.itemsize for a in args)
                      + B * T * OUT_W * 4)

    slab = pl.pallas_call(
        make_fused_kernel(n_layer, B, T, D, H, C),
        out_shape=jax.ShapeDtypeStruct((B * T, OUT_W), jnp.float32),
        in_specs=[pl.BlockSpec(memory_space=pltpu.MemorySpace.VMEM)] * len(args),
        out_specs=pl.BlockSpec(memory_space=pltpu.MemorySpace.VMEM),
        scratch_shapes=[pltpu.VMEM((B * T, H), jnp.float32)],
        cost_estimate=pl.CostEstimate(flops=flops,
                                      transcendentals=transcendentals,
                                      bytes_accessed=bytes_accessed),
    )(*args)

    output = slab[:, :H].reshape(B, T, H)                 # GRU sequence output
    log_probs = slab[:, H:H + C]                          # rows already in view(-1, 2) order
    return output, log_probs


# ----------------------------------------------------------------------------
# Full forward (mirrors GRU.forward in the PyTorch module)
# ----------------------------------------------------------------------------
@jax.jit
def gru_forward(x, layer0_params, deep_params, w_c, b_c, sample_key):
    output, log_probs = fused_gru_classifier(x, layer0_params, deep_params, w_c, b_c)

    # torch.distributions.Categorical(softmax(logits)): sample + log_prob + sample.
    # categorical() is shift-invariant, so the kernel's log-probs serve as logits.
    # TODO(synk): stochastic sampling has no bit-exact Pallas/PyTorch equivalent;
    # it uses jax.random on the Pallas-computed log-probs.
    k1, k2 = jax.random.split(sample_key)
    a1 = jax.random.categorical(k1, log_probs, axis=-1)                   # .sample()
    log_prob = jnp.take_along_axis(log_probs, a1[:, None], axis=1)[:, 0]  # .log_prob(a1)
    a2 = jax.random.categorical(k2, log_probs, axis=-1)                   # .sample()
    action = a2.reshape(-1, 1).reshape(-1).astype(jnp.int32)
    return action, [log_prob], output, log_probs


# ----------------------------------------------------------------------------
# Pure-JAX reference (per-gate weights, PyTorch gate order r, z, n) for checking.
# ----------------------------------------------------------------------------
def gru_ref(x, gru_params):
    h_in = x  # (B, T, D)
    for (wih, whh, bih, bhh) in gru_params:
        B = h_in.shape[0]
        H = whh.shape[-1]
        h0 = jnp.zeros((B, H), jnp.float32)

        def step(h, x_t):
            gi = jnp.einsum('bd,gdh->gbh', x_t, wih) + bih
            gh = jnp.einsum('bh,ghk->gbk', h, whh) + bhh
            r = jax.nn.sigmoid(gi[0] + gh[0])
            z = jax.nn.sigmoid(gi[1] + gh[1])
            n = jnp.tanh(gi[2] + r * gh[2])
            h_new = (1.0 - z) * n + z * h
            return h_new, h_new

        _, ys = jax.lax.scan(step, h0, jnp.transpose(h_in, (1, 0, 2)))
        h_in = jnp.transpose(ys, (1, 0, 2))
    return h_in


if __name__ == "__main__":
    B, T = 2, 8
    in_dim, hidden_dim, n_layer = 4, 32, 2
    H = hidden_dim

    key = jax.random.PRNGKey(0)
    key, kx, ksample = jax.random.split(key, 3)

    # Deterministic PyTorch-style uniform(-1/sqrt(H), 1/sqrt(H)) per-gate params,
    # gate order r, z, n.
    bound = 1.0 / jnp.sqrt(jnp.float32(hidden_dim))
    gru_params = []
    for layer in range(n_layer):
        d_in = in_dim if layer == 0 else hidden_dim
        key, k1, k2, k3, k4 = jax.random.split(key, 5)
        wih = jax.random.uniform(k1, (3, d_in, hidden_dim), jnp.float32, -bound, bound)
        whh = jax.random.uniform(k2, (3, hidden_dim, hidden_dim), jnp.float32, -bound, bound)
        bih = jax.random.uniform(k3, (3, 1, hidden_dim), jnp.float32, -bound, bound)
        bhh = jax.random.uniform(k4, (3, 1, hidden_dim), jnp.float32, -bound, bound)
        gru_params.append((wih, whh, bih, bhh))

    key, kc1, kc2 = jax.random.split(key, 3)
    w_c = jax.random.uniform(kc1, (hidden_dim, 2), jnp.float32, -bound, bound)
    b_c = jax.random.uniform(kc2, (1, 2), jnp.float32, -bound, bound)

    # ---- kernel-side fused layouts (weights pre-cast to bf16 for the MXU) ------
    # Layer 0: gate-fused (D,3H)/(H,3H); bhh_r/bhh_z folded into the input bias.
    wih0, whh0, bih0, bhh0 = gru_params[0]
    layer0_params = (
        jnp.concatenate([wih0[0], wih0[1], wih0[2]], axis=-1).astype(jnp.bfloat16),
        jnp.concatenate([whh0[0], whh0[1], whh0[2]], axis=-1).astype(jnp.bfloat16),
        jnp.concatenate([bih0[0] + bhh0[0], bih0[1] + bhh0[1], bih0[2]], axis=-1),
        bhh0[2],
    )
    # Layers >= 1: one (2H, 4H) weight so [x_in | h] @ Wcat yields
    # [r_pre | z_pre | W_in x + b_in | W_hn h + b_hn] in a single MXU push per step.
    deep_params = []
    zero_hh = jnp.zeros((H, H), jnp.float32)
    for (wih, whh, bih, bhh) in gru_params[1:]:
        top = jnp.concatenate([wih[0], wih[1], wih[2], zero_hh], axis=-1)   # input rows
        bot = jnp.concatenate([whh[0], whh[1], zero_hh, whh[2]], axis=-1)   # hidden rows
        wcat = jnp.concatenate([top, bot], axis=0).astype(jnp.bfloat16)     # (2H, 4H)
        bcat = jnp.concatenate([bih[0] + bhh[0], bih[1] + bhh[1], bih[2], bhh[2]], axis=-1)
        deep_params.append((wcat, bcat))
    deep_params = tuple(deep_params)
    w_c_k = w_c.astype(jnp.bfloat16)

    x = jax.random.normal(kx, (B, T, in_dim), jnp.float32)

    action, saved_log_probs, gru_out, log_probs = gru_forward(
        x, layer0_params, deep_params, w_c_k, b_c, ksample)
    jax.block_until_ready((action, saved_log_probs, gru_out, log_probs))

    # Sanity check against a pure-JAX f32 reference (bf16 MXU operands -> loose tol).
    ref_out = gru_ref(x, gru_params)
    assert jnp.allclose(gru_out, ref_out, atol=5e-2, rtol=5e-2), "GRU mismatch"
    ref_logits = ref_out.reshape(-1, hidden_dim) @ w_c + b_c
    ref_logp = jax.nn.log_softmax(ref_logits, axis=-1)
    assert jnp.allclose(log_probs, ref_logp, atol=5e-2, rtol=5e-2), "classifier mismatch"
    assert action.shape == (B * T,)
    assert saved_log_probs[0].shape == (B * T,)

    print("KERNEL_OK")
</pallas_src>

<mosaic_0001>
module attributes {stable_mosaic.version = 11 : i64} {
  func.func @kernel(%arg0: memref<16x4xf32, #tpu.memory_space<vmem>>, %arg1: memref<4x96xbf16, #tpu.memory_space<vmem>>, %arg2: memref<32x96xbf16, #tpu.memory_space<vmem>>, %arg3: memref<1x96xf32, #tpu.memory_space<vmem>>, %arg4: memref<1x32xf32, #tpu.memory_space<vmem>>, %arg5: memref<64x128xbf16, #tpu.memory_space<vmem>>, %arg6: memref<1x128xf32, #tpu.memory_space<vmem>>, %arg7: memref<32x2xbf16, #tpu.memory_space<vmem>>, %arg8: memref<1x2xf32, #tpu.memory_space<vmem>>, %arg9: memref<16x128xf32, #tpu.memory_space<vmem>>, %arg10: memref<16x32xf32, #tpu.memory_space<vmem>>) attributes {dimension_semantics = [], scalar_prefetch = 0 : i64, scratch_operands = 1 : i64, tpu.core_type = #tpu.core_type<tc>} {
    %c0 = arith.constant 0 : index
    %c0_0 = arith.constant 0 : index
    %0 = vector.load %arg0[%c0, %c0_0] : memref<16x4xf32, #tpu.memory_space<vmem>>, vector<16x4xf32>
    %1 = arith.truncf %0 : vector<16x4xf32> to vector<16x4xbf16>
    %c0_1 = arith.constant 0 : index
    %c0_2 = arith.constant 0 : index
    %2 = vector.load %arg1[%c0_1, %c0_2] : memref<4x96xbf16, #tpu.memory_space<vmem>>, vector<4x96xbf16>
    %cst = arith.constant dense<0.000000e+00> : vector<16x96xf32>
    %3 = tpu.matmul %1, %2, %cst {dimension_numbers = #tpu.dot_dimension_numbers<[1], [0], [0], [1], [0, 0, 1, 1], [], []>} : vector<16x4xbf16>, vector<4x96xbf16>, vector<16x96xf32> -> vector<16x96xf32>
    %c0_3 = arith.constant 0 : index
    %c0_4 = arith.constant 0 : index
    %4 = vector.load %arg3[%c0_3, %c0_4] : memref<1x96xf32, #tpu.memory_space<vmem>>, vector<1x96xf32>
    %5 = vector.broadcast %4 : vector<1x96xf32> to vector<16x96xf32>
    %6 = arith.addf %3, %5 : vector<16x96xf32>
    %c0_5 = arith.constant 0 : index
    %c0_6 = arith.constant 0 : index
    %7 = vector.load %arg2[%c0_5, %c0_6] : memref<32x96xbf16, #tpu.memory_space<vmem>>, vector<32x96xbf16>
    %c0_7 = arith.constant 0 : index
    %c0_8 = arith.constant 0 : index
    %8 = vector.load %arg4[%c0_7, %c0_8] : memref<1x32xf32, #tpu.memory_space<vmem>>, vector<1x32xf32>
    %9 = vector.shape_cast %8 : vector<1x32xf32> to vector<1x32xf32>
    %10 = vector.broadcast %9 : vector<1x32xf32> to vector<2x32xf32>
    %c0_9 = arith.constant 0 : index
    %c0_10 = arith.constant 0 : index
    %11 = vector.load %arg5[%c0_9, %c0_10] : memref<64x128xbf16, #tpu.memory_space<vmem>>, vector<64x128xbf16>
    %c0_11 = arith.constant 0 : index
    %c0_12 = arith.constant 0 : index
    %12 = vector.load %arg6[%c0_11, %c0_12] : memref<1x128xf32, #tpu.memory_space<vmem>>, vector<1x128xf32>
    %13 = vector.shape_cast %12 : vector<1x128xf32> to vector<1x128xf32>
    %14 = vector.broadcast %13 : vector<1x128xf32> to vector<2x128xf32>
    %cst_13 = arith.constant 0.000000e+00 : f32
    %15 = vector.broadcast %cst_13 : f32 to vector<2x32xf32>
    %cst_14 = arith.constant 0.000000e+00 : f32
    %16 = vector.broadcast %cst_14 : f32 to vector<2x32xf32>
    %17 = vector.extract_strided_slice %6 {offsets = [0, 0], sizes = [1, 96], strides = [1, 1]} : vector<16x96xf32> to vector<1x96xf32>
    %18 = vector.extract_strided_slice %6 {offsets = [8, 0], sizes = [1, 96], strides = [1, 1]} : vector<16x96xf32> to vector<1x96xf32>
    %19 = tpu.concatenate %17, %18 in 0 : vector<1x96xf32>, vector<1x96xf32> -> vector<2x96xf32>
    %20 = arith.truncf %15 : vector<2x32xf32> to vector<2x32xbf16>
    %cst_15 = arith.constant dense<0.000000e+00> : vector<2x96xf32>
    %21 = tpu.matmul %20, %7, %cst_15 {dimension_numbers = #tpu.dot_dimension_numbers<[1], [0], [0], [1], [0, 0, 1, 1], [], []>} : vector<2x32xbf16>, vector<32x96xbf16>, vector<2x96xf32> -> vector<2x96xf32>
    %22 = vector.extract_strided_slice %19 {offsets = [0, 0], sizes = [2, 64], strides = [1, 1]} : vector<2x96xf32> to vector<2x64xf32>
    %23 = vector.extract_strided_slice %21 {offsets = [0, 0], sizes = [2, 64], strides = [1, 1]} : vector<2x96xf32> to vector<2x64xf32>
    %24 = arith.addf %22, %23 : vector<2x64xf32>
    %25 = arith.negf %24 : vector<2x64xf32>
    %26 = math.exp %25 : vector<2x64xf32>
    %cst_16 = arith.constant 1.000000e+00 : f32
    %27 = vector.broadcast %cst_16 : f32 to vector<2x64xf32>
    %28 = arith.addf %27, %26 : vector<2x64xf32>
    %29 = arith.divf %27, %28 : vector<2x64xf32>
    %30 = vector.extract_strided_slice %29 {offsets = [0, 0], sizes = [2, 32], strides = [1, 1]} : vector<2x64xf32> to vector<2x32xf32>
    %31 = vector.extract_strided_slice %29 {offsets = [0, 32], sizes = [2, 32], strides = [1, 1]} : vector<2x64xf32> to vector<2x32xf32>
    %32 = vector.extract_strided_slice %19 {offsets = [0, 64], sizes = [2, 32], strides = [1, 1]} : vector<2x96xf32> to vector<2x32xf32>
    %33 = vector.extract_strided_slice %21 {offsets = [0, 64], sizes = [2, 32], strides = [1, 1]} : vector<2x96xf32> to vector<2x32xf32>
    %34 = arith.addf %33, %10 : vector<2x32xf32>
    %35 = arith.mulf %30, %34 : vector<2x32xf32>
    %36 = arith.addf %32, %35 : vector<2x32xf32>
    %37 = math.tanh %36 : vector<2x32xf32>
    %cst_17 = arith.constant 1.000000e+00 : f32
    %38 = vector.broadcast %cst_17 : f32 to vector<2x32xf32>
    %39 = arith.subf %38, %31 : vector<2x32xf32>
    %40 = arith.mulf %39, %37 : vector<2x32xf32>
    %41 = arith.mulf %31, %15 : vector<2x32xf32>
    %42 = arith.addf %40, %41 : vector<2x32xf32>
    %43 = vector.extract_strided_slice %6 {offsets = [1, 0], sizes = [1, 96], strides = [1, 1]} : vector<16x96xf32> to vector<1x96xf32>
    %44 = vector.extract_strided_slice %6 {offsets = [9, 0], sizes = [1, 96], strides = [1, 1]} : vector<16x96xf32> to vector<1x96xf32>
    %45 = tpu.concatenate %43, %44 in 0 : vector<1x96xf32>, vector<1x96xf32> -> vector<2x96xf32>
    %46 = arith.truncf %42 : vector<2x32xf32> to vector<2x32xbf16>
    %cst_18 = arith.constant dense<0.000000e+00> : vector<2x96xf32>
    %47 = tpu.matmul %46, %7, %cst_18 {dimension_numbers = #tpu.dot_dimension_numbers<[1], [0], [0], [1], [0, 0, 1, 1], [], []>} : vector<2x32xbf16>, vector<32x96xbf16>, vector<2x96xf32> -> vector<2x96xf32>
    %48 = vector.extract_strided_slice %45 {offsets = [0, 0], sizes = [2, 64], strides = [1, 1]} : vector<2x96xf32> to vector<2x64xf32>
    %49 = vector.extract_strided_slice %47 {offsets = [0, 0], sizes = [2, 64], strides = [1, 1]} : vector<2x96xf32> to vector<2x64xf32>
    %50 = arith.addf %48, %49 : vector<2x64xf32>
    %51 = arith.negf %50 : vector<2x64xf32>
    %52 = math.exp %51 : vector<2x64xf32>
    %cst_19 = arith.constant 1.000000e+00 : f32
    %53 = vector.broadcast %cst_19 : f32 to vector<2x64xf32>
    %54 = arith.addf %53, %52 : vector<2x64xf32>
    %55 = arith.divf %53, %54 : vector<2x64xf32>
    %56 = vector.extract_strided_slice %55 {offsets = [0, 0], sizes = [2, 32], strides = [1, 1]} : vector<2x64xf32> to vector<2x32xf32>
    %57 = vector.extract_strided_slice %55 {offsets = [0, 32], sizes = [2, 32], strides = [1, 1]} : vector<2x64xf32> to vector<2x32xf32>
    %58 = vector.extract_strided_slice %45 {offsets = [0, 64], sizes = [2, 32], strides = [1, 1]} : vector<2x96xf32> to vector<2x32xf32>
    %59 = vector.extract_strided_slice %47 {offsets = [0, 64], sizes = [2, 32], strides = [1, 1]} : vector<2x96xf32> to vector<2x32xf32>
    %60 = arith.addf %59, %10 : vector<2x32xf32>
    %61 = arith.mulf %56, %60 : vector<2x32xf32>
    %62 = arith.addf %58, %61 : vector<2x32xf32>
    %63 = math.tanh %62 : vector<2x32xf32>
    %cst_20 = arith.constant 1.000000e+00 : f32
    %64 = vector.broadcast %cst_20 : f32 to vector<2x32xf32>
    %65 = arith.subf %64, %57 : vector<2x32xf32>
    %66 = arith.mulf %65, %63 : vector<2x32xf32>
    %67 = arith.mulf %57, %42 : vector<2x32xf32>
    %68 = arith.addf %66, %67 : vector<2x32xf32>
    %69 = tpu.concatenate %42, %16 in 1 : vector<2x32xf32>, vector<2x32xf32> -> vector<2x64xf32>
    %70 = arith.truncf %69 : vector<2x64xf32> to vector<2x64xbf16>
    %cst_21 = arith.constant dense<0.000000e+00> : vector<2x128xf32>
    %71 = tpu.matmul %70, %11, %cst_21 {dimension_numbers = #tpu.dot_dimension_numbers<[1], [0], [0], [1], [0, 0, 1, 1], [], []>} : vector<2x64xbf16>, vector<64x128xbf16>, vector<2x128xf32> -> vector<2x128xf32>
    %72 = arith.addf %71, %14 : vector<2x128xf32>
    %73 = vector.extract_strided_slice %72 {offsets = [0, 0], sizes = [2, 64], strides = [1, 1]} : vector<2x128xf32> to vector<2x64xf32>
    %74 = arith.negf %73 : vector<2x64xf32>
    %75 = math.exp %74 : vector<2x64xf32>
    %cst_22 = arith.constant 1.000000e+00 : f32
    %76 = vector.broadcast %cst_22 : f32 to vector<2x64xf32>
    %77 = arith.addf %76, %75 : vector<2x64xf32>
    %78 = arith.divf %76, %77 : vector<2x64xf32>
    %79 = vector.extract_strided_slice %78 {offsets = [0, 0], sizes = [2, 32], strides = [1, 1]} : vector<2x64xf32> to vector<2x32xf32>
    %80 = vector.extract_strided_slice %78 {offsets = [0, 32], sizes = [2, 32], strides = [1, 1]} : vector<2x64xf32> to vector<2x32xf32>
    %81 = vector.extract_strided_slice %72 {offsets = [0, 64], sizes = [2, 32], strides = [1, 1]} : vector<2x128xf32> to vector<2x32xf32>
    %82 = vector.extract_strided_slice %72 {offsets = [0, 96], sizes = [2, 32], strides = [1, 1]} : vector<2x128xf32> to vector<2x32xf32>
    %83 = arith.mulf %79, %82 : vector<2x32xf32>
    %84 = arith.addf %81, %83 : vector<2x32xf32>
    %85 = math.tanh %84 : vector<2x32xf32>
    %cst_23 = arith.constant 1.000000e+00 : f32
    %86 = vector.broadcast %cst_23 : f32 to vector<2x32xf32>
    %87 = arith.subf %86, %80 : vector<2x32xf32>
    %88 = arith.mulf %87, %85 : vector<2x32xf32>
    %89 = arith.mulf %80, %16 : vector<2x32xf32>
    %90 = arith.addf %88, %89 : vector<2x32xf32>
    %91 = vector.extract_strided_slice %90 {offsets = [0, 0], sizes = [1, 32], strides = [1, 1]} : vector<2x32xf32> to vector<1x32xf32>
    %c0_24 = arith.constant 0 : index
    %c0_25 = arith.constant 0 : index
    %92 = vector.load %arg10[%c0_24, %c0_25] : memref<16x32xf32, #tpu.memory_space<vmem>>, vector<1x32xf32>
    tpu.vector_store %arg10[%c0_24, %c0_25], %91 {strides = array<i32>} : memref<16x32xf32, #tpu.memory_space<vmem>>, vector<1x32xf32>,
    %93 = vector.extract_strided_slice %90 {offsets = [1, 0], sizes = [1, 32], strides = [1, 1]} : vector<2x32xf32> to vector<1x32xf32>
    %c8 = arith.constant 8 : index
    %c0_26 = arith.constant 0 : index
    %94 = vector.load %arg10[%c8, %c0_26] : memref<16x32xf32, #tpu.memory_space<vmem>>, vector<1x32xf32>
    tpu.vector_store %arg10[%c8, %c0_26], %93 {strides = array<i32>} : memref<16x32xf32, #tpu.memory_space<vmem>>, vector<1x32xf32>,
    %95 = vector.extract_strided_slice %6 {offsets = [2, 0], sizes = [1, 96], strides = [1, 1]} : vector<16x96xf32> to vector<1x96xf32>
    %96 = vector.extract_strided_slice %6 {offsets = [10, 0], sizes = [1, 96], strides = [1, 1]} : vector<16x96xf32> to vector<1x96xf32>
    %97 = tpu.concatenate %95, %96 in 0 : vector<1x96xf32>, vector<1x96xf32> -> vector<2x96xf32>
    %98 = arith.truncf %68 : vector<2x32xf32> to vector<2x32xbf16>
    %cst_27 = arith.constant dense<0.000000e+00> : vector<2x96xf32>
    %99 = tpu.matmul %98, %7, %cst_27 {dimension_numbers = #tpu.dot_dimension_numbers<[1], [0], [0], [1], [0, 0, 1, 1], [], []>} : vector<2x32xbf16>, vector<32x96xbf16>, vector<2x96xf32> -> vector<2x96xf32>
    %100 = vector.extract_strided_slice %97 {offsets = [0, 0], sizes = [2, 64], strides = [1, 1]} : vector<2x96xf32> to vector<2x64xf32>
    %101 = vector.extract_strided_slice %99 {offsets = [0, 0], sizes = [2, 64], strides = [1, 1]} : vector<2x96xf32> to vector<2x64xf32>
    %102 = arith.addf %100, %101 : vector<2x64xf32>
    %103 = arith.negf %102 : vector<2x64xf32>
    %104 = math.exp %103 : vector<2x64xf32>
    %cst_28 = arith.constant 1.000000e+00 : f32
    %105 = vector.broadcast %cst_28 : f32 to vector<2x64xf32>
    %106 = arith.addf %105, %104 : vector<2x64xf32>
    %107 = arith.divf %105, %106 : vector<2x64xf32>
    %108 = vector.extract_strided_slice %107 {offsets = [0, 0], sizes = [2, 32], strides = [1, 1]} : vector<2x64xf32> to vector<2x32xf32>
    %109 = vector.extract_strided_slice %107 {offsets = [0, 32], sizes = [2, 32], strides = [1, 1]} : vector<2x64xf32> to vector<2x32xf32>
    %110 = vector.extract_strided_slice %97 {offsets = [0, 64], sizes = [2, 32], strides = [1, 1]} : vector<2x96xf32> to vector<2x32xf32>
    %111 = vector.extract_strided_slice %99 {offsets = [0, 64], sizes = [2, 32], strides = [1, 1]} : vector<2x96xf32> to vector<2x32xf32>
    %112 = arith.addf %111, %10 : vector<2x32xf32>
    %113 = arith.mulf %108, %112 : vector<2x32xf32>
    %114 = arith.addf %110, %113 : vector<2x32xf32>
    %115 = math.tanh %114 : vector<2x32xf32>
    %cst_29 = arith.constant 1.000000e+00 : f32
    %116 = vector.broadcast %cst_29 : f32 to vector<2x32xf32>
    %117 = arith.subf %116, %109 : vector<2x32xf32>
    %118 = arith.mulf %117, %115 : vector<2x32xf32>
    %119 = arith.mulf %109, %68 : vector<2x32xf32>
    %120 = arith.addf %118, %119 : vector<2x32xf32>
    %121 = tpu.concatenate %68, %90 in 1 : vector<2x32xf32>, vector<2x32xf32> -> vector<2x64xf32>
    %122 = arith.truncf %121 : vector<2x64xf32> to vector<2x64xbf16>
    %cst_30 = arith.constant dense<0.000000e+00> : vector<2x128xf32>
    %123 = tpu.matmul %122, %11, %cst_30 {dimension_numbers = #tpu.dot_dimension_numbers<[1], [0], [0], [1], [0, 0, 1, 1], [], []>} : vector<2x64xbf16>, vector<64x128xbf16>, vector<2x128xf32> -> vector<2x128xf32>
    %124 = arith.addf %123, %14 : vector<2x128xf32>
    %125 = vector.extract_strided_slice %124 {offsets = [0, 0], sizes = [2, 64], strides = [1, 1]} : vector<2x128xf32> to vector<2x64xf32>
    %126 = arith.negf %125 : vector<2x64xf32>
    %127 = math.exp %126 : vector<2x64xf32>
    %cst_31 = arith.constant 1.000000e+00 : f32
    %128 = vector.broadcast %cst_31 : f32 to vector<2x64xf32>
    %129 = arith.addf %128, %127 : vector<2x64xf32>
    %130 = arith.divf %128, %129 : vector<2x64xf32>
    %131 = vector.extract_strided_slice %130 {offsets = [0, 0], sizes = [2, 32], strides = [1, 1]} : vector<2x64xf32> to vector<2x32xf32>
    %132 = vector.extract_strided_slice %130 {offsets = [0, 32], sizes = [2, 32], strides = [1, 1]} : vector<2x64xf32> to vector<2x32xf32>
    %133 = vector.extract_strided_slice %124 {offsets = [0, 64], sizes = [2, 32], strides = [1, 1]} : vector<2x128xf32> to vector<2x32xf32>
    %134 = vector.extract_strided_slice %124 {offsets = [0, 96], sizes = [2, 32], strides = [1, 1]} : vector<2x128xf32> to vector<2x32xf32>
    %135 = arith.mulf %131, %134 : vector<2x32xf32>
    %136 = arith.addf %133, %135 : vector<2x32xf32>
    %137 = math.tanh %136 : vector<2x32xf32>
    %cst_32 = arith.constant 1.000000e+00 : f32
    %138 = vector.broadcast %cst_32 : f32 to vector<2x32xf32>
    %139 = arith.subf %138, %132 : vector<2x32xf32>
    %140 = arith.mulf %139, %137 : vector<2x32xf32>
    %141 = arith.mulf %132, %90 : vector<2x32xf32>
    %142 = arith.addf %140, %141 : vector<2x32xf32>
    %143 = vector.extract_strided_slice %142 {offsets = [0, 0], sizes = [1, 32], strides = [1, 1]} : vector<2x32xf32> to vector<1x32xf32>
    %c1 = arith.constant 1 : index
    %c0_33 = arith.constant 0 : index
    %144 = vector.load %arg10[%c1, %c0_33] : memref<16x32xf32, #tpu.memory_space<vmem>>, vector<1x32xf32>
    tpu.vector_store %arg10[%c1, %c0_33], %143 {strides = array<i32>} : memref<16x32xf32, #tpu.memory_space<vmem>>, vector<1x32xf32>,
    %145 = vector.extract_strided_slice %142 {offsets = [1, 0], sizes = [1, 32], strides = [1, 1]} : vector<2x32xf32> to vector<1x32xf32>
    %c9 = arith.constant 9 : index
    %c0_34 = arith.constant 0 : index
    %146 = vector.load %arg10[%c9, %c0_34] : memref<16x32xf32, #tpu.memory_space<vmem>>, vector<1x32xf32>
    tpu.vector_store %arg10[%c9, %c0_34], %145 {strides = array<i32>} : memref<16x32xf32, #tpu.memory_space<vmem>>, vector<1x32xf32>,
    %147 = vector.extract_strided_slice %6 {offsets = [3, 0], sizes = [1, 96], strides = [1, 1]} : vector<16x96xf32> to vector<1x96xf32>
    %148 = vector.extract_strided_slice %6 {offsets = [11, 0], sizes = [1, 96], strides = [1, 1]} : vector<16x96xf32> to vector<1x96xf32>
    %149 = tpu.concatenate %147, %148 in 0 : vector<1x96xf32>, vector<1x96xf32> -> vector<2x96xf32>
    %150 = arith.truncf %120 : vector<2x32xf32> to vector<2x32xbf16>
    %cst_35 = arith.constant dense<0.000000e+00> : vector<2x96xf32>
    %151 = tpu.matmul %150, %7, %cst_35 {dimension_numbers = #tpu.dot_dimension_numbers<[1], [0], [0], [1], [0, 0, 1, 1], [], []>} : vector<2x32xbf16>, vector<32x96xbf16>, vector<2x96xf32> -> vector<2x96xf32>
    %152 = vector.extract_strided_slice %149 {offsets = [0, 0], sizes = [2, 64], strides = [1, 1]} : vector<2x96xf32> to vector<2x64xf32>
    %153 = vector.extract_strided_slice %151 {offsets = [0, 0], sizes = [2, 64], strides = [1, 1]} : vector<2x96xf32> to vector<2x64xf32>
    %154 = arith.addf %152, %153 : vector<2x64xf32>
    %155 = arith.negf %154 : vector<2x64xf32>
    %156 = math.exp %155 : vector<2x64xf32>
    %cst_36 = arith.constant 1.000000e+00 : f32
    %157 = vector.broadcast %cst_36 : f32 to vector<2x64xf32>
    %158 = arith.addf %157, %156 : vector<2x64xf32>
    %159 = arith.divf %157, %158 : vector<2x64xf32>
    %160 = vector.extract_strided_slice %159 {offsets = [0, 0], sizes = [2, 32], strides = [1, 1]} : vector<2x64xf32> to vector<2x32xf32>
    %161 = vector.extract_strided_slice %159 {offsets = [0, 32], sizes = [2, 32], strides = [1, 1]} : vector<2x64xf32> to vector<2x32xf32>
    %162 = vector.extract_strided_slice %149 {offsets = [0, 64], sizes = [2, 32], strides = [1, 1]} : vector<2x96xf32> to vector<2x32xf32>
    %163 = vector.extract_strided_slice %151 {offsets = [0, 64], sizes = [2, 32], strides = [1, 1]} : vector<2x96xf32> to vector<2x32xf32>
    %164 = arith.addf %163, %10 : vector<2x32xf32>
    %165 = arith.mulf %160, %164 : vector<2x32xf32>
    %166 = arith.addf %162, %165 : vector<2x32xf32>
    %167 = math.tanh %166 : vector<2x32xf32>
    %cst_37 = arith.constant 1.000000e+00 : f32
    %168 = vector.broadcast %cst_37 : f32 to vector<2x32xf32>
    %169 = arith.subf %168, %161 : vector<2x32xf32>
    %170 = arith.mulf %169, %167 : vector<2x32xf32>
    %171 = arith.mulf %161, %120 : vector<2x32xf32>
    %172 = arith.addf %170, %171 : vector<2x32xf32>
    %173 = tpu.concatenate %120, %142 in 1 : vector<2x32xf32>, vector<2x32xf32> -> vector<2x64xf32>
    %174 = arith.truncf %173 : vector<2x64xf32> to vector<2x64xbf16>
    %cst_38 = arith.constant dense<0.000000e+00> : vector<2x128xf32>
    %175 = tpu.matmul %174, %11, %cst_38 {dimension_numbers = #tpu.dot_dimension_numbers<[1], [0], [0], [1], [0, 0, 1, 1], [], []>} : vector<2x64xbf16>, vector<64x128xbf16>, vector<2x128xf32> -> vector<2x128xf32>
    %176 = arith.addf %175, %14 : vector<2x128xf32>
    %177 = vector.extract_strided_slice %176 {offsets = [0, 0], sizes = [2, 64], strides = [1, 1]} : vector<2x128xf32> to vector<2x64xf32>
    %178 = arith.negf %177 : vector<2x64xf32>
    %179 = math.exp %178 : vector<2x64xf32>
    %cst_39 = arith.constant 1.000000e+00 : f32
    %180 = vector.broadcast %cst_39 : f32 to vector<2x64xf32>
    %181 = arith.addf %180, %179 : vector<2x64xf32>
    %182 = arith.divf %180, %181 : vector<2x64xf32>
    %183 = vector.extract_strided_slice %182 {offsets = [0, 0], sizes = [2, 32], strides = [1, 1]} : vector<2x64xf32> to vector<2x32xf32>
    %184 = vector.extract_strided_slice %182 {offsets = [0, 32], sizes = [2, 32], strides = [1, 1]} : vector<2x64xf32> to vector<2x32xf32>
    %185 = vector.extract_strided_slice %176 {offsets = [0, 64], sizes = [2, 32], strides = [1, 1]} : vector<2x128xf32> to vector<2x32xf32>
    %186 = vector.extract_strided_slice %176 {offsets = [0, 96], sizes = [2, 32], strides = [1, 1]} : vector<2x128xf32> to vector<2x32xf32>
    %187 = arith.mulf %183, %186 : vector<2x32xf32>
    %188 = arith.addf %185, %187 : vector<2x32xf32>
    %189 = math.tanh %188 : vector<2x32xf32>
    %cst_40 = arith.constant 1.000000e+00 : f32
    %190 = vector.broadcast %cst_40 : f32 to vector<2x32xf32>
    %191 = arith.subf %190, %184 : vector<2x32xf32>
    %192 = arith.mulf %191, %189 : vector<2x32xf32>
    %193 = arith.mulf %184, %142 : vector<2x32xf32>
    %194 = arith.addf %192, %193 : vector<2x32xf32>
    %195 = vector.extract_strided_slice %194 {offsets = [0, 0], sizes = [1, 32], strides = [1, 1]} : vector<2x32xf32> to vector<1x32xf32>
    %c2 = arith.constant 2 : index
    %c0_41 = arith.constant 0 : index
    %196 = vector.load %arg10[%c2, %c0_41] : memref<16x32xf32, #tpu.memory_space<vmem>>, vector<1x32xf32>
    tpu.vector_store %arg10[%c2, %c0_41], %195 {strides = array<i32>} : memref<16x32xf32, #tpu.memory_space<vmem>>, vector<1x32xf32>,
    %197 = vector.extract_strided_slice %194 {offsets = [1, 0], sizes = [1, 32], strides = [1, 1]} : vector<2x32xf32> to vector<1x32xf32>
    %c10 = arith.constant 10 : index
    %c0_42 = arith.constant 0 : index
    %198 = vector.load %arg10[%c10, %c0_42] : memref<16x32xf32, #tpu.memory_space<vmem>>, vector<1x32xf32>
    tpu.vector_store %arg10[%c10, %c0_42], %197 {strides = array<i32>} : memref<16x32xf32, #tpu.memory_space<vmem>>, vector<1x32xf32>,
    %199 = vector.extract_strided_slice %6 {offsets = [4, 0], sizes = [1, 96], strides = [1, 1]} : vector<16x96xf32> to vector<1x96xf32>
    %200 = vector.extract_strided_slice %6 {offsets = [12, 0], sizes = [1, 96], strides = [1, 1]} : vector<16x96xf32> to vector<1x96xf32>
    %201 = tpu.concatenate %199, %200 in 0 : vector<1x96xf32>, vector<1x96xf32> -> vector<2x96xf32>
    %202 = arith.truncf %172 : vector<2x32xf32> to vector<2x32xbf16>
    %cst_43 = arith.constant dense<0.000000e+00> : vector<2x96xf32>
    %203 = tpu.matmul %202, %7, %cst_43 {dimension_numbers = #tpu.dot_dimension_numbers<[1], [0], [0], [1], [0, 0, 1, 1], [], []>} : vector<2x32xbf16>, vector<32x96xbf16>, vector<2x96xf32> -> vector<2x96xf32>
    %204 = vector.extract_strided_slice %201 {offsets = [0, 0], sizes = [2, 64], strides = [1, 1]} : vector<2x96xf32> to vector<2x64xf32>
    %205 = vector.extract_strided_slice %203 {offsets = [0, 0], sizes = [2, 64], strides = [1, 1]} : vector<2x96xf32> to vector<2x64xf32>
    %206 = arith.addf %204, %205 : vector<2x64xf32>
    %207 = arith.negf %206 : vector<2x64xf32>
    %208 = math.exp %207 : vector<2x64xf32>
    %cst_44 = arith.constant 1.000000e+00 : f32
    %209 = vector.broadcast %cst_44 : f32 to vector<2x64xf32>
    %210 = arith.addf %209, %208 : vector<2x64xf32>
    %211 = arith.divf %209, %210 : vector<2x64xf32>
    %212 = vector.extract_strided_slice %211 {offsets = [0, 0], sizes = [2, 32], strides = [1, 1]} : vector<2x64xf32> to vector<2x32xf32>
    %213 = vector.extract_strided_slice %211 {offsets = [0, 32], sizes = [2, 32], strides = [1, 1]} : vector<2x64xf32> to vector<2x32xf32>
    %214 = vector.extract_strided_slice %201 {offsets = [0, 64], sizes = [2, 32], strides = [1, 1]} : vector<2x96xf32> to vector<2x32xf32>
    %215 = vector.extract_strided_slice %203 {offsets = [0, 64], sizes = [2, 32], strides = [1, 1]} : vector<2x96xf32> to vector<2x32xf32>
    %216 = arith.addf %215, %10 : vector<2x32xf32>
    %217 = arith.mulf %212, %216 : vector<2x32xf32>
    %218 = arith.addf %214, %217 : vector<2x32xf32>
    %219 = math.tanh %218 : vector<2x32xf32>
    %cst_45 = arith.constant 1.000000e+00 : f32
    %220 = vector.broadcast %cst_45 : f32 to vector<2x32xf32>
    %221 = arith.subf %220, %213 : vector<2x32xf32>
    %222 = arith.mulf %221, %219 : vector<2x32xf32>
    %223 = arith.mulf %213, %172 : vector<2x32xf32>
    %224 = arith.addf %222, %223 : vector<2x32xf32>
    %225 = tpu.concatenate %172, %194 in 1 : vector<2x32xf32>, vector<2x32xf32> -> vector<2x64xf32>
    %226 = arith.truncf %225 : vector<2x64xf32> to vector<2x64xbf16>
    %cst_46 = arith.constant dense<0.000000e+00> : vector<2x128xf32>
    %227 = tpu.matmul %226, %11, %cst_46 {dimension_numbers = #tpu.dot_dimension_numbers<[1], [0], [0], [1], [0, 0, 1, 1], [], []>} : vector<2x64xbf16>, vector<64x128xbf16>, vector<2x128xf32> -> vector<2x128xf32>
    %228 = arith.addf %227, %14 : vector<2x128xf32>
    %229 = vector.extract_strided_slice %228 {offsets = [0, 0], sizes = [2, 64], strides = [1, 1]} : vector<2x128xf32> to vector<2x64xf32>
    %230 = arith.negf %229 : vector<2x64xf32>
    %231 = math.exp %230 : vector<2x64xf32>
    %cst_47 = arith.constant 1.000000e+00 : f32
    %232 = vector.broadcast %cst_47 : f32 to vector<2x64xf32>
    %233 = arith.addf %232, %231 : vector<2x64xf32>
    %234 = arith.divf %232, %233 : vector<2x64xf32>
    %235 = vector.extract_strided_slice %234 {offsets = [0, 0], sizes = [2, 32], strides = [1, 1]} : vector<2x64xf32> to vector<2x32xf32>
    %236 = vector.extract_strided_slice %234 {offsets = [0, 32], sizes = [2, 32], strides = [1, 1]} : vector<2x64xf32> to vector<2x32xf32>
    %237 = vector.extract_strided_slice %228 {offsets = [0, 64], sizes = [2, 32], strides = [1, 1]} : vector<2x128xf32> to vector<2x32xf32>
    %238 = vector.extract_strided_slice %228 {offsets = [0, 96], sizes = [2, 32], strides = [1, 1]} : vector<2x128xf32> to vector<2x32xf32>
    %239 = arith.mulf %235, %238 : vector<2x32xf32>
    %240 = arith.addf %237, %239 : vector<2x32xf32>
    %241 = math.tanh %240 : vector<2x32xf32>
    %cst_48 = arith.constant 1.000000e+00 : f32
    %242 = vector.broadcast %cst_48 : f32 to vector<2x32xf32>
    %243 = arith.subf %242, %236 : vector<2x32xf32>
    %244 = arith.mulf %243, %241 : vector<2x32xf32>
    %245 = arith.mulf %236, %194 : vector<2x32xf32>
    %246 = arith.addf %244, %245 : vector<2x32xf32>
    %247 = vector.extract_strided_slice %246 {offsets = [0, 0], sizes = [1, 32], strides = [1, 1]} : vector<2x32xf32> to vector<1x32xf32>
    %c3 = arith.constant 3 : index
    %c0_49 = arith.constant 0 : index
    %248 = vector.load %arg10[%c3, %c0_49] : memref<16x32xf32, #tpu.memory_space<vmem>>, vector<1x32xf32>
    tpu.vector_store %arg10[%c3, %c0_49], %247 {strides = array<i32>} : memref<16x32xf32, #tpu.memory_space<vmem>>, vector<1x32xf32>,
    %249 = vector.extract_strided_slice %246 {offsets = [1, 0], sizes = [1, 32], strides = [1, 1]} : vector<2x32xf32> to vector<1x32xf32>
    %c11 = arith.constant 11 : index
    %c0_50 = arith.constant 0 : index
    %250 = vector.load %arg10[%c11, %c0_50] : memref<16x32xf32, #tpu.memory_space<vmem>>, vector<1x32xf32>
    tpu.vector_store %arg10[%c11, %c0_50], %249 {strides = array<i32>} : memref<16x32xf32, #tpu.memory_space<vmem>>, vector<1x32xf32>,
    %251 = vector.extract_strided_slice %6 {offsets = [5, 0], sizes = [1, 96], strides = [1, 1]} : vector<16x96xf32> to vector<1x96xf32>
    %252 = vector.extract_strided_slice %6 {offsets = [13, 0], sizes = [1, 96], strides = [1, 1]} : vector<16x96xf32> to vector<1x96xf32>
    %253 = tpu.concatenate %251, %252 in 0 : vector<1x96xf32>, vector<1x96xf32> -> vector<2x96xf32>
    %254 = arith.truncf %224 : vector<2x32xf32> to vector<2x32xbf16>
    %cst_51 = arith.constant dense<0.000000e+00> : vector<2x96xf32>
    %255 = tpu.matmul %254, %7, %cst_51 {dimension_numbers = #tpu.dot_dimension_numbers<[1], [0], [0], [1], [0, 0, 1, 1], [], []>} : vector<2x32xbf16>, vector<32x96xbf16>, vector<2x96xf32> -> vector<2x96xf32>
    %256 = vector.extract_strided_slice %253 {offsets = [0, 0], sizes = [2, 64], strides = [1, 1]} : vector<2x96xf32> to vector<2x64xf32>
    %257 = vector.extract_strided_slice %255 {offsets = [0, 0], sizes = [2, 64], strides = [1, 1]} : vector<2x96xf32> to vector<2x64xf32>
    %258 = arith.addf %256, %257 : vector<2x64xf32>
    %259 = arith.negf %258 : vector<2x64xf32>
    %260 = math.exp %259 : vector<2x64xf32>
    %cst_52 = arith.constant 1.000000e+00 : f32
    %261 = vector.broadcast %cst_52 : f32 to vector<2x64xf32>
    %262 = arith.addf %261, %260 : vector<2x64xf32>
    %263 = arith.divf %261, %262 : vector<2x64xf32>
    %264 = vector.extract_strided_slice %263 {offsets = [0, 0], sizes = [2, 32], strides = [1, 1]} : vector<2x64xf32> to vector<2x32xf32>
    %265 = vector.extract_strided_slice %263 {offsets = [0, 32], sizes = [2, 32], strides = [1, 1]} : vector<2x64xf32> to vector<2x32xf32>
    %266 = vector.extract_strided_slice %253 {offsets = [0, 64], sizes = [2, 32], strides = [1, 1]} : vector<2x96xf32> to vector<2x32xf32>
    %267 = vector.extract_strided_slice %255 {offsets = [0, 64], sizes = [2, 32], strides = [1, 1]} : vector<2x96xf32> to vector<2x32xf32>
    %268 = arith.addf %267, %10 : vector<2x32xf32>
    %269 = arith.mulf %264, %268 : vector<2x32xf32>
    %270 = arith.addf %266, %269 : vector<2x32xf32>
    %271 = math.tanh %270 : vector<2x32xf32>
    %cst_53 = arith.constant 1.000000e+00 : f32
    %272 = vector.broadcast %cst_53 : f32 to vector<2x32xf32>
    %273 = arith.subf %272, %265 : vector<2x32xf32>
    %274 = arith.mulf %273, %271 : vector<2x32xf32>
    %275 = arith.mulf %265, %224 : vector<2x32xf32>
    %276 = arith.addf %274, %275 : vector<2x32xf32>
    %277 = tpu.concatenate %224, %246 in 1 : vector<2x32xf32>, vector<2x32xf32> -> vector<2x64xf32>
    %278 = arith.truncf %277 : vector<2x64xf32> to vector<2x64xbf16>
    %cst_54 = arith.constant dense<0.000000e+00> : vector<2x128xf32>
    %279 = tpu.matmul %278, %11, %cst_54 {dimension_numbers = #tpu.dot_dimension_numbers<[1], [0], [0], [1], [0, 0, 1, 1], [], []>} : vector<2x64xbf16>, vector<64x128xbf16>, vector<2x128xf32> -> vector<2x128xf32>
    %280 = arith.addf %279, %14 : vector<2x128xf32>
    %281 = vector.extract_strided_slice %280 {offsets = [0, 0], sizes = [2, 64], strides = [1, 1]} : vector<2x128xf32> to vector<2x64xf32>
    %282 = arith.negf %281 : vector<2x64xf32>
    %283 = math.exp %282 : vector<2x64xf32>
    %cst_55 = arith.constant 1.000000e+00 : f32
    %284 = vector.broadcast %cst_55 : f32 to vector<2x64xf32>
    %285 = arith.addf %284, %283 : vector<2x64xf32>
    %286 = arith.divf %284, %285 : vector<2x64xf32>
    %287 = vector.extract_strided_slice %286 {offsets = [0, 0], sizes = [2, 32], strides = [1, 1]} : vector<2x64xf32> to vector<2x32xf32>
    %288 = vector.extract_strided_slice %286 {offsets = [0, 32], sizes = [2, 32], strides = [1, 1]} : vector<2x64xf32> to vector<2x32xf32>
    %289 = vector.extract_strided_slice %280 {offsets = [0, 64], sizes = [2, 32], strides = [1, 1]} : vector<2x128xf32> to vector<2x32xf32>
    %290 = vector.extract_strided_slice %280 {offsets = [0, 96], sizes = [2, 32], strides = [1, 1]} : vector<2x128xf32> to vector<2x32xf32>
    %291 = arith.mulf %287, %290 : vector<2x32xf32>
    %292 = arith.addf %289, %291 : vector<2x32xf32>
    %293 = math.tanh %292 : vector<2x32xf32>
    %cst_56 = arith.constant 1.000000e+00 : f32
    %294 = vector.broadcast %cst_56 : f32 to vector<2x32xf32>
    %295 = arith.subf %294, %288 : vector<2x32xf32>
    %296 = arith.mulf %295, %293 : vector<2x32xf32>
    %297 = arith.mulf %288, %246 : vector<2x32xf32>
    %298 = arith.addf %296, %297 : vector<2x32xf32>
    %299 = vector.extract_strided_slice %298 {offsets = [0, 0], sizes = [1, 32], strides = [1, 1]} : vector<2x32xf32> to vector<1x32xf32>
    %c4 = arith.constant 4 : index
    %c0_57 = arith.constant 0 : index
    %300 = vector.load %arg10[%c4, %c0_57] : memref<16x32xf32, #tpu.memory_space<vmem>>, vector<1x32xf32>
    tpu.vector_store %arg10[%c4, %c0_57], %299 {strides = array<i32>} : memref<16x32xf32, #tpu.memory_space<vmem>>, vector<1x32xf32>,
    %301 = vector.extract_strided_slice %298 {offsets = [1, 0], sizes = [1, 32], strides = [1, 1]} : vector<2x32xf32> to vector<1x32xf32>
    %c12 = arith.constant 12 : index
    %c0_58 = arith.constant 0 : index
    %302 = vector.load %arg10[%c12, %c0_58] : memref<16x32xf32, #tpu.memory_space<vmem>>, vector<1x32xf32>
    tpu.vector_store %arg10[%c12, %c0_58], %301 {strides = array<i32>} : memref<16x32xf32, #tpu.memory_space<vmem>>, vector<1x32xf32>,
    %303 = vector.extract_strided_slice %6 {offsets = [6, 0], sizes = [1, 96], strides = [1, 1]} : vector<16x96xf32> to vector<1x96xf32>
    %304 = vector.extract_strided_slice %6 {offsets = [14, 0], sizes = [1, 96], strides = [1, 1]} : vector<16x96xf32> to vector<1x96xf32>
    %305 = tpu.concatenate %303, %304 in 0 : vector<1x96xf32>, vector<1x96xf32> -> vector<2x96xf32>
    %306 = arith.truncf %276 : vector<2x32xf32> to vector<2x32xbf16>
    %cst_59 = arith.constant dense<0.000000e+00> : vector<2x96xf32>
    %307 = tpu.matmul %306, %7, %cst_59 {dimension_numbers = #tpu.dot_dimension_numbers<[1], [0], [0], [1], [0, 0, 1, 1], [], []>} : vector<2x32xbf16>, vector<32x96xbf16>, vector<2x96xf32> -> vector<2x96xf32>
    %308 = vector.extract_strided_slice %305 {offsets = [0, 0], sizes = [2, 64], strides = [1, 1]} : vector<2x96xf32> to vector<2x64xf32>
    %309 = vector.extract_strided_slice %307 {offsets = [0, 0], sizes = [2, 64], strides = [1, 1]} : vector<2x96xf32> to vector<2x64xf32>
    %310 = arith.addf %308, %309 : vector<2x64xf32>
    %311 = arith.negf %310 : vector<2x64xf32>
    %312 = math.exp %311 : vector<2x64xf32>
    %cst_60 = arith.constant 1.000000e+00 : f32
    %313 = vector.broadcast %cst_60 : f32 to vector<2x64xf32>
    %314 = arith.addf %313, %312 : vector<2x64xf32>
    %315 = arith.divf %313, %314 : vector<2x64xf32>
    %316 = vector.extract_strided_slice %315 {offsets = [0, 0], sizes = [2, 32], strides = [1, 1]} : vector<2x64xf32> to vector<2x32xf32>
    %317 = vector.extract_strided_slice %315 {offsets = [0, 32], sizes = [2, 32], strides = [1, 1]} : vector<2x64xf32> to vector<2x32xf32>
    %318 = vector.extract_strided_slice %305 {offsets = [0, 64], sizes = [2, 32], strides = [1, 1]} : vector<2x96xf32> to vector<2x32xf32>
    %319 = vector.extract_strided_slice %307 {offsets = [0, 64], sizes = [2, 32], strides = [1, 1]} : vector<2x96xf32> to vector<2x32xf32>
    %320 = arith.addf %319, %10 : vector<2x32xf32>
    %321 = arith.mulf %316, %320 : vector<2x32xf32>
    %322 = arith.addf %318, %321 : vector<2x32xf32>
    %323 = math.tanh %322 : vector<2x32xf32>
    %cst_61 = arith.constant 1.000000e+00 : f32
    %324 = vector.broadcast %cst_61 : f32 to vector<2x32xf32>
    %325 = arith.subf %324, %317 : vector<2x32xf32>
    %326 = arith.mulf %325, %323 : vector<2x32xf32>
    %327 = arith.mulf %317, %276 : vector<2x32xf32>
    %328 = arith.addf %326, %327 : vector<2x32xf32>
    %329 = tpu.concatenate %276, %298 in 1 : vector<2x32xf32>, vector<2x32xf32> -> vector<2x64xf32>
    %330 = arith.truncf %329 : vector<2x64xf32> to vector<2x64xbf16>
    %cst_62 = arith.constant dense<0.000000e+00> : vector<2x128xf32>
    %331 = tpu.matmul %330, %11, %cst_62 {dimension_numbers = #tpu.dot_dimension_numbers<[1], [0], [0], [1], [0, 0, 1, 1], [], []>} : vector<2x64xbf16>, vector<64x128xbf16>, vector<2x128xf32> -> vector<2x128xf32>
    %332 = arith.addf %331, %14 : vector<2x128xf32>
    %333 = vector.extract_strided_slice %332 {offsets = [0, 0], sizes = [2, 64], strides = [1, 1]} : vector<2x128xf32> to vector<2x64xf32>
    %334 = arith.negf %333 : vector<2x64xf32>
    %335 = math.exp %334 : vector<2x64xf32>
    %cst_63 = arith.constant 1.000000e+00 : f32
    %336 = vector.broadcast %cst_63 : f32 to vector<2x64xf32>
    %337 = arith.addf %336, %335 : vector<2x64xf32>
    %338 = arith.divf %336, %337 : vector<2x64xf32>
    %339 = vector.extract_strided_slice %338 {offsets = [0, 0], sizes = [2, 32], strides = [1, 1]} : vector<2x64xf32> to vector<2x32xf32>
    %340 = vector.extract_strided_slice %338 {offsets = [0, 32], sizes = [2, 32], strides = [1, 1]} : vector<2x64xf32> to vector<2x32xf32>
    %341 = vector.extract_strided_slice %332 {offsets = [0, 64], sizes = [2, 32], strides = [1, 1]} : vector<2x128xf32> to vector<2x32xf32>
    %342 = vector.extract_strided_slice %332 {offsets = [0, 96], sizes = [2, 32], strides = [1, 1]} : vector<2x128xf32> to vector<2x32xf32>
    %343 = arith.mulf %339, %342 : vector<2x32xf32>
    %344 = arith.addf %341, %343 : vector<2x32xf32>
    %345 = math.tanh %344 : vector<2x32xf32>
    %cst_64 = arith.constant 1.000000e+00 : f32
    %346 = vector.broadcast %cst_64 : f32 to vector<2x32xf32>
    %347 = arith.subf %346, %340 : vector<2x32xf32>
    %348 = arith.mulf %347, %345 : vector<2x32xf32>
    %349 = arith.mulf %340, %298 : vector<2x32xf32>
    %350 = arith.addf %348, %349 : vector<2x32xf32>
    %351 = vector.extract_strided_slice %350 {offsets = [0, 0], sizes = [1, 32], strides = [1, 1]} : vector<2x32xf32> to vector<1x32xf32>
    %c5 = arith.constant 5 : index
    %c0_65 = arith.constant 0 : index
    %352 = vector.load %arg10[%c5, %c0_65] : memref<16x32xf32, #tpu.memory_space<vmem>>, vector<1x32xf32>
    tpu.vector_store %arg10[%c5, %c0_65], %351 {strides = array<i32>} : memref<16x32xf32, #tpu.memory_space<vmem>>, vector<1x32xf32>,
    %353 = vector.extract_strided_slice %350 {offsets = [1, 0], sizes = [1, 32], strides = [1, 1]} : vector<2x32xf32> to vector<1x32xf32>
    %c13 = arith.constant 13 : index
    %c0_66 = arith.constant 0 : index
    %354 = vector.load %arg10[%c13, %c0_66] : memref<16x32xf32, #tpu.memory_space<vmem>>, vector<1x32xf32>
    tpu.vector_store %arg10[%c13, %c0_66], %353 {strides = array<i32>} : memref<16x32xf32, #tpu.memory_space<vmem>>, vector<1x32xf32>,
    %355 = vector.extract_strided_slice %6 {offsets = [7, 0], sizes = [1, 96], strides = [1, 1]} : vector<16x96xf32> to vector<1x96xf32>
    %356 = vector.extract_strided_slice %6 {offsets = [15, 0], sizes = [1, 96], strides = [1, 1]} : vector<16x96xf32> to vector<1x96xf32>
    %357 = tpu.concatenate %355, %356 in 0 : vector<1x96xf32>, vector<1x96xf32> -> vector<2x96xf32>
    %358 = arith.truncf %328 : vector<2x32xf32> to vector<2x32xbf16>
    %cst_67 = arith.constant dense<0.000000e+00> : vector<2x96xf32>
    %359 = tpu.matmul %358, %7, %cst_67 {dimension_numbers = #tpu.dot_dimension_numbers<[1], [0], [0], [1], [0, 0, 1, 1], [], []>} : vector<2x32xbf16>, vector<32x96xbf16>, vector<2x96xf32> -> vector<2x96xf32>
    %360 = vector.extract_strided_slice %357 {offsets = [0, 0], sizes = [2, 64], strides = [1, 1]} : vector<2x96xf32> to vector<2x64xf32>
    %361 = vector.extract_strided_slice %359 {offsets = [0, 0], sizes = [2, 64], strides = [1, 1]} : vector<2x96xf32> to vector<2x64xf32>
    %362 = arith.addf %360, %361 : vector<2x64xf32>
    %363 = arith.negf %362 : vector<2x64xf32>
    %364 = math.exp %363 : vector<2x64xf32>
    %cst_68 = arith.constant 1.000000e+00 : f32
    %365 = vector.broadcast %cst_68 : f32 to vector<2x64xf32>
    %366 = arith.addf %365, %364 : vector<2x64xf32>
    %367 = arith.divf %365, %366 : vector<2x64xf32>
    %368 = vector.extract_strided_slice %367 {offsets = [0, 0], sizes = [2, 32], strides = [1, 1]} : vector<2x64xf32> to vector<2x32xf32>
    %369 = vector.extract_strided_slice %367 {offsets = [0, 32], sizes = [2, 32], strides = [1, 1]} : vector<2x64xf32> to vector<2x32xf32>
    %370 = vector.extract_strided_slice %357 {offsets = [0, 64], sizes = [2, 32], strides = [1, 1]} : vector<2x96xf32> to vector<2x32xf32>
    %371 = vector.extract_strided_slice %359 {offsets = [0, 64], sizes = [2, 32], strides = [1, 1]} : vector<2x96xf32> to vector<2x32xf32>
    %372 = arith.addf %371, %10 : vector<2x32xf32>
    %373 = arith.mulf %368, %372 : vector<2x32xf32>
    %374 = arith.addf %370, %373 : vector<2x32xf32>
    %375 = math.tanh %374 : vector<2x32xf32>
    %cst_69 = arith.constant 1.000000e+00 : f32
    %376 = vector.broadcast %cst_69 : f32 to vector<2x32xf32>
    %377 = arith.subf %376, %369 : vector<2x32xf32>
    %378 = arith.mulf %377, %375 : vector<2x32xf32>
    %379 = arith.mulf %369, %328 : vector<2x32xf32>
    %380 = arith.addf %378, %379 : vector<2x32xf32>
    %381 = tpu.concatenate %328, %350 in 1 : vector<2x32xf32>, vector<2x32xf32> -> vector<2x64xf32>
    %382 = arith.truncf %381 : vector<2x64xf32> to vector<2x64xbf16>
    %cst_70 = arith.constant dense<0.000000e+00> : vector<2x128xf32>
    %383 = tpu.matmul %382, %11, %cst_70 {dimension_numbers = #tpu.dot_dimension_numbers<[1], [0], [0], [1], [0, 0, 1, 1], [], []>} : vector<2x64xbf16>, vector<64x128xbf16>, vector<2x128xf32> -> vector<2x128xf32>
    %384 = arith.addf %383, %14 : vector<2x128xf32>
    %385 = vector.extract_strided_slice %384 {offsets = [0, 0], sizes = [2, 64], strides = [1, 1]} : vector<2x128xf32> to vector<2x64xf32>
    %386 = arith.negf %385 : vector<2x64xf32>
    %387 = math.exp %386 : vector<2x64xf32>
    %cst_71 = arith.constant 1.000000e+00 : f32
    %388 = vector.broadcast %cst_71 : f32 to vector<2x64xf32>
    %389 = arith.addf %388, %387 : vector<2x64xf32>
    %390 = arith.divf %388, %389 : vector<2x64xf32>
    %391 = vector.extract_strided_slice %390 {offsets = [0, 0], sizes = [2, 32], strides = [1, 1]} : vector<2x64xf32> to vector<2x32xf32>
    %392 = vector.extract_strided_slice %390 {offsets = [0, 32], sizes = [2, 32], strides = [1, 1]} : vector<2x64xf32> to vector<2x32xf32>
    %393 = vector.extract_strided_slice %384 {offsets = [0, 64], sizes = [2, 32], strides = [1, 1]} : vector<2x128xf32> to vector<2x32xf32>
    %394 = vector.extract_strided_slice %384 {offsets = [0, 96], sizes = [2, 32], strides = [1, 1]} : vector<2x128xf32> to vector<2x32xf32>
    %395 = arith.mulf %391, %394 : vector<2x32xf32>
    %396 = arith.addf %393, %395 : vector<2x32xf32>
    %397 = math.tanh %396 : vector<2x32xf32>
    %cst_72 = arith.constant 1.000000e+00 : f32
    %398 = vector.broadcast %cst_72 : f32 to vector<2x32xf32>
    %399 = arith.subf %398, %392 : vector<2x32xf32>
    %400 = arith.mulf %399, %397 : vector<2x32xf32>
    %401 = arith.mulf %392, %350 : vector<2x32xf32>
    %402 = arith.addf %400, %401 : vector<2x32xf32>
    %403 = vector.extract_strided_slice %402 {offsets = [0, 0], sizes = [1, 32], strides = [1, 1]} : vector<2x32xf32> to vector<1x32xf32>
    %c6 = arith.constant 6 : index
    %c0_73 = arith.constant 0 : index
    %404 = vector.load %arg10[%c6, %c0_73] : memref<16x32xf32, #tpu.memory_space<vmem>>, vector<1x32xf32>
    tpu.vector_store %arg10[%c6, %c0_73], %403 {strides = array<i32>} : memref<16x32xf32, #tpu.memory_space<vmem>>, vector<1x32xf32>,
    %405 = vector.extract_strided_slice %402 {offsets = [1, 0], sizes = [1, 32], strides = [1, 1]} : vector<2x32xf32> to vector<1x32xf32>
    %c14 = arith.constant 14 : index
    %c0_74 = arith.constant 0 : index
    %406 = vector.load %arg10[%c14, %c0_74] : memref<16x32xf32, #tpu.memory_space<vmem>>, vector<1x32xf32>
    tpu.vector_store %arg10[%c14, %c0_74], %405 {strides = array<i32>} : memref<16x32xf32, #tpu.memory_space<vmem>>, vector<1x32xf32>,
    %407 = tpu.concatenate %380, %402 in 1 : vector<2x32xf32>, vector<2x32xf32> -> vector<2x64xf32>
    %408 = arith.truncf %407 : vector<2x64xf32> to vector<2x64xbf16>
    %cst_75 = arith.constant dense<0.000000e+00> : vector<2x128xf32>
    %409 = tpu.matmul %408, %11, %cst_75 {dimension_numbers = #tpu.dot_dimension_numbers<[1], [0], [0], [1], [0, 0, 1, 1], [], []>} : vector<2x64xbf16>, vector<64x128xbf16>, vector<2x128xf32> -> vector<2x128xf32>
    %410 = arith.addf %409, %14 : vector<2x128xf32>
    %411 = vector.extract_strided_slice %410 {offsets = [0, 0], sizes = [2, 64], strides = [1, 1]} : vector<2x128xf32> to vector<2x64xf32>
    %412 = arith.negf %411 : vector<2x64xf32>
    %413 = math.exp %412 : vector<2x64xf32>
    %cst_76 = arith.constant 1.000000e+00 : f32
    %414 = vector.broadcast %cst_76 : f32 to vector<2x64xf32>
    %415 = arith.addf %414, %413 : vector<2x64xf32>
    %416 = arith.divf %414, %415 : vector<2x64xf32>
    %417 = vector.extract_strided_slice %416 {offsets = [0, 0], sizes = [2, 32], strides = [1, 1]} : vector<2x64xf32> to vector<2x32xf32>
    %418 = vector.extract_strided_slice %416 {offsets = [0, 32], sizes = [2, 32], strides = [1, 1]} : vector<2x64xf32> to vector<2x32xf32>
    %419 = vector.extract_strided_slice %410 {offsets = [0, 64], sizes = [2, 32], strides = [1, 1]} : vector<2x128xf32> to vector<2x32xf32>
    %420 = vector.extract_strided_slice %410 {offsets = [0, 96], sizes = [2, 32], strides = [1, 1]} : vector<2x128xf32> to vector<2x32xf32>
    %421 = arith.mulf %417, %420 : vector<2x32xf32>
    %422 = arith.addf %419, %421 : vector<2x32xf32>
    %423 = math.tanh %422 : vector<2x32xf32>
    %cst_77 = arith.constant 1.000000e+00 : f32
    %424 = vector.broadcast %cst_77 : f32 to vector<2x32xf32>
    %425 = arith.subf %424, %418 : vector<2x32xf32>
    %426 = arith.mulf %425, %423 : vector<2x32xf32>
    %427 = arith.mulf %418, %402 : vector<2x32xf32>
    %428 = arith.addf %426, %427 : vector<2x32xf32>
    %429 = vector.extract_strided_slice %428 {offsets = [0, 0], sizes = [1, 32], strides = [1, 1]} : vector<2x32xf32> to vector<1x32xf32>
    %c7 = arith.constant 7 : index
    %c0_78 = arith.constant 0 : index
    %430 = vector.load %arg10[%c7, %c0_78] : memref<16x32xf32, #tpu.memory_space<vmem>>, vector<1x32xf32>
    tpu.vector_store %arg10[%c7, %c0_78], %429 {strides = array<i32>} : memref<16x32xf32, #tpu.memory_space<vmem>>, vector<1x32xf32>,
    %431 = vector.extract_strided_slice %428 {offsets = [1, 0], sizes = [1, 32], strides = [1, 1]} : vector<2x32xf32> to vector<1x32xf32>
    %c15 = arith.constant 15 : index
    %c0_79 = arith.constant 0 : index
    %432 = vector.load %arg10[%c15, %c0_79] : memref<16x32xf32, #tpu.memory_space<vmem>>, vector<1x32xf32>
    tpu.vector_store %arg10[%c15, %c0_79], %431 {strides = array<i32>} : memref<16x32xf32, #tpu.memory_space<vmem>>, vector<1x32xf32>,
    %c0_80 = arith.constant 0 : index
    %c0_81 = arith.constant 0 : index
    %433 = vector.load %arg10[%c0_80, %c0_81] : memref<16x32xf32, #tpu.memory_space<vmem>>, vector<16x32xf32>
    %434 = arith.truncf %433 : vector<16x32xf32> to vector<16x32xbf16>
    %c0_82 = arith.constant 0 : index
    %c0_83 = arith.constant 0 : index
    %435 = vector.load %arg7[%c0_82, %c0_83] : memref<32x2xbf16, #tpu.memory_space<vmem>>, vector<32x2xbf16>
    %cst_84 = arith.constant dense<0.000000e+00> : vector<16x2xf32>
    %436 = tpu.matmul %434, %435, %cst_84 {dimension_numbers = #tpu.dot_dimension_numbers<[1], [0], [0], [1], [0, 0, 1, 1], [], []>} : vector<16x32xbf16>, vector<32x2xbf16>, vector<16x2xf32> -> vector<16x2xf32>
    %c0_85 = arith.constant 0 : index
    %c0_86 = arith.constant 0 : index
    %437 = vector.load %arg8[%c0_85, %c0_86] : memref<1x2xf32, #tpu.memory_space<vmem>>, vector<1x2xf32>
    %438 = vector.broadcast %437 : vector<1x2xf32> to vector<16x2xf32>
    %439 = arith.addf %436, %438 : vector<16x2xf32>
    %cst_87 = arith.constant dense<0xFF800000> : vector<16xf32>
    %440 = vector.multi_reduction <maximumf>, %439, %cst_87 [1] : vector<16x2xf32> to vector<16xf32>
    %441 = vector.shape_cast %440 : vector<16xf32> to vector<16x1xf32>
    %442 = vector.broadcast %441 : vector<16x1xf32> to vector<16x2xf32>
    %443 = arith.subf %439, %442 : vector<16x2xf32>
    %444 = math.exp %443 : vector<16x2xf32>
    %cst_88 = arith.constant dense<0.000000e+00> : vector<16xf32>
    %445 = vector.multi_reduction <add>, %444, %cst_88 [1] : vector<16x2xf32> to vector<16xf32>
    %446 = vector.shape_cast %445 : vector<16xf32> to vector<16x1xf32>
    %447 = math.log %446 : vector<16x1xf32>
    %448 = vector.broadcast %447 : vector<16x1xf32> to vector<16x2xf32>
    %449 = arith.subf %443, %448 : vector<16x2xf32>
    %c0_89 = arith.constant 0 : index
    %c0_90 = arith.constant 0 : index
    %450 = vector.load %arg9[%c0_89, %c0_90] : memref<16x128xf32, #tpu.memory_space<vmem>>, vector<16x32xf32>
    tpu.vector_store %arg9[%c0_89, %c0_90], %433 {strides = array<i32>} : memref<16x128xf32, #tpu.memory_space<vmem>>, vector<16x32xf32>,
    %c0_91 = arith.constant 0 : index
    %c32 = arith.constant 32 : index
    %451 = vector.load %arg9[%c0_91, %c32] : memref<16x128xf32, #tpu.memory_space<vmem>>, vector<16x2xf32>
    tpu.vector_store %arg9[%c0_91, %c32], %449 {strides = array<i32>} : memref<16x128xf32, #tpu.memory_space<vmem>>, vector<16x2xf32>,
    %cst_92 = arith.constant 0.000000e+00 : f32
    %452 = vector.broadcast %cst_92 : f32 to vector<16x94xf32>
    %c0_93 = arith.constant 0 : index
    %c34 = arith.constant 34 : index
    %453 = vector.load %arg9[%c0_93, %c34] : memref<16x128xf32, #tpu.memory_space<vmem>>, vector<16x94xf32>
    tpu.vector_store %arg9[%c0_93, %c34], %452 {strides = array<i32>} : memref<16x128xf32, #tpu.memory_space<vmem>>, vector<16x94xf32>,
    return
  }
}

</mosaic_0001>

<llo_original>
// kernel: gru_forward.3
$region0: #{gru_forward.3}
  #allocation0 [shape = 'u32[]', space=smem, size = 0x4, offset = 0x4, fixed_abs, tag = 'smem constant byte address 0x4 - core index']
  #allocation1 [shape = 'u32[72,128]{1,0:T(1,128)}', space=vmem, size = 0x9000, scoped, tag = 'internal scratch']
  #allocation2 [shape = 'f32[16,32]{1,0:T(8,128)}', space=vmem, size = 0x2000, scoped, tag = 'scratch operand']
  %s0 = inlined_call_operand.vmem [shape: f32[16,4], index: 0, kind: input, shape index: {}]
  %s1 = inlined_call_operand.vmem [shape: bf16[4,96], index: 1, kind: input, shape index: {}]
  %s2 = inlined_call_operand.vmem [shape: bf16[32,96], index: 2, kind: input, shape index: {}]
  %s3 = inlined_call_operand.vmem [shape: f32[1,96], index: 3, kind: input, shape index: {}]
  %s4 = inlined_call_operand.vmem [shape: f32[1,32], index: 4, kind: input, shape index: {}]
  %s5 = inlined_call_operand.vmem [shape: bf16[64,128], index: 5, kind: input, shape index: {}]
  %s6 = inlined_call_operand.vmem [shape: f32[1,128], index: 6, kind: input, shape index: {}]
  %s7 = inlined_call_operand.vmem [shape: bf16[32,2], index: 7, kind: input, shape index: {}]
  %s8 = inlined_call_operand.vmem [shape: f32[1,2], index: 8, kind: input, shape index: {}]
  %s9 = inlined_call_operand.vmem [shape: f32[16,128], index: 9, kind: output, shape index: {}]
  %s10 = sld [smem:[#allocation0]]
  $region46: #{gru_forward.3} parent=0
    _
  %s12 = ssub.s32 1, %s10
  %s13 = scalar_select 0, %s12, %s10
  // Predicated region
  $region2: #{gru_forward.3} parent=0 // pred_check
    _
  $region3: #{gru_forward.3} parent=0 // pred_check_branch
    %15 = sbr.rel (0) target = $region5
  $region4: #{gru_forward.3} parent=0 // pred_region
    _
  $region5: #{gru_forward.3} parent=0 // pred_fallthru
    _
  // Predicated region
  $region6: #{gru_forward.3} parent=0 // pred_check
    _
  $region7: #{gru_forward.3} parent=0 // pred_check_branch
    %17 = sbr.rel (0) target = $region9
  $region8: #{gru_forward.3} parent=0 // pred_region
    _
  $region9: #{gru_forward.3} parent=0 // pred_fallthru
    _
  // Predicated region
  $region10: #{gru_forward.3} parent=0 // pred_check
    _
  $region11: #{gru_forward.3} parent=0 // pred_check_branch
    %19 = sbr.rel (0) target = $region13
  $region12: #{gru_forward.3} parent=0 // pred_region
    _
  $region13: #{gru_forward.3} parent=0 // pred_fallthru
    _
  // Predicated region
  $region14: #{gru_forward.3} parent=0 // pred_check
    _
  $region15: #{gru_forward.3} parent=0 // pred_check_branch
    %21 = sbr.rel (0) target = $region17
  $region16: #{gru_forward.3} parent=0 // pred_region
    _
  $region17: #{gru_forward.3} parent=0 // pred_fallthru
    _
  // Predicated region
  $region18: #{gru_forward.3} parent=0 // pred_check
    _
  $region19: #{gru_forward.3} parent=0 // pred_check_branch
    %23 = sbr.rel (0) target = $region21
  $region20: #{gru_forward.3} parent=0 // pred_region
    _
  $region21: #{gru_forward.3} parent=0 // pred_fallthru
    _
  // Predicated region
  $region22: #{gru_forward.3} parent=0 // pred_check
    _
  $region23: #{gru_forward.3} parent=0 // pred_check_branch
    %25 = sbr.rel (0) target = $region25
  $region24: #{gru_forward.3} parent=0 // pred_region
    _
  $region25: #{gru_forward.3} parent=0 // pred_fallthru
    _
  // Predicated region
  $region26: #{gru_forward.3} parent=0 // pred_check
    _
  $region27: #{gru_forward.3} parent=0 // pred_check_branch
    %27 = sbr.rel (0) target = $region29
  $region28: #{gru_forward.3} parent=0 // pred_region
    _
  $region29: #{gru_forward.3} parent=0 // pred_fallthru
    _
  // Predicated region
  $region30: #{gru_forward.3} parent=0 // pred_check
    _
  $region31: #{gru_forward.3} parent=0 // pred_check_branch
    %29 = sbr.rel (0) target = $region33
  $region32: #{gru_forward.3} parent=0 // pred_region
    _
  $region33: #{gru_forward.3} parent=0 // pred_fallthru
    _
  // Predicated region
  $region34: #{gru_forward.3} parent=0 // pred_check
    _
  $region35: #{gru_forward.3} parent=0 // pred_check_branch
    %31 = sbr.rel (0) target = $region37
  $region36: #{gru_forward.3} parent=0 // pred_region
    _
  $region37: #{gru_forward.3} parent=0 // pred_fallthru
    _
  %v33 = vld [vmem:[%s0] sm:$0xff]
  %v34 = vld [vmem:[%s0 + $0x8] sm:$0xff]
  %v35 = vpack.c.bf16 %v34, %v33
  %v36 = vld [vmem:[%s1] sm:$0x3]
  %v37 = vld [vmem:[%s3] sm:$0x1]
  %v39 = vperm.slane %v37, 0
  %vm41 = vcmask 31744
  %v43 = vsel %vm41, %v35, 0
  %vm45 = vcmask 1041408
  %v47 = vsel %vm45, %v36, 0
  %49 = vmatpush.bf16.msra.mxu0 0
  %50 = vmatpush.bf16.msra.mxu0 0
  %51 = vmatpush.bf16.msra.mxu0 0
  %52 = vmatpush.bf16.msra.mxu0 0
  %53 = vmatpush.bf16.msra.mxu0 0
  %54 = vmatpush.bf16.msra.mxu0 0
  %55 = vmatpush.bf16.msra.mxu0 0
  %56 = vmatpush.bf16.msra.mxu0 %v47
  %57 = vmatmul.bf16.gmra.mxu0 %v43
  %v58 = vpop.f32.mrf.mxu0
  %v59 = vadd.f32 %v39, %v58
  %v60 = vpop.f32.mrf.mxu0
  %v61 = vadd.f32 %v39, %v60
  %62 = vdwg.mxu0
  %v63 = vld [vmem:[%s2] sm:$0xf]
  %v64 = vld [vmem:[%s2 + $0x4] sm:$0xf]
  %v65 = vld [vmem:[%s2 + $0x8] sm:$0xf]
  %v66 = vld [vmem:[%s2 + $0xc] sm:$0xf]
  %v67 = vld [vmem:[%s4] sm:$0x1]
  %v69 = vperm.slane %v67, 0
  %v70 = vld [vmem:[%s5] sm:$0xf]
  %v71 = vld [vmem:[%s5 + $0x4] sm:$0xf]
  %v72 = vld [vmem:[%s5 + $0x8] sm:$0xf]
  %v73 = vld [vmem:[%s5 + $0xc] sm:$0xf]
  %v74 = vld [vmem:[%s5 + $0x10] sm:$0xf]
  %v75 = vld [vmem:[%s5 + $0x14] sm:$0xf]
  %v76 = vld [vmem:[%s5 + $0x18] sm:$0xf]
  %v77 = vld [vmem:[%s5 + $0x1c] sm:$0xf]
  %v78 = vld [vmem:[%s6] sm:$0x1]
  %v80 = vperm.slane %v78, 0
  %v83 = vrot.slane %v61, 7
  %vm85 = vcmask 1040384
  %v86 = vsel %vm85, %v59, %v83
  %v91 = vunpack.c.l.b16 %v63
  %v92 = vunpack.c.l.b16 %v64
  %v93 = vunpack.c.l.b16 %v65
  %v94 = vunpack.c.l.b16 %v66
  %v95 = vpack.c.b16 %v92, %v91
  %v96 = vpack.c.b16 %v94, %v93
  %vm99 = vcmask 261120
  %v101 = vsel %vm99, 0, 0
  %103 = vmatpush.bf16.msra.mxu0 0
  %104 = vmatpush.bf16.msra.mxu0 0
  %105 = vmatpush.bf16.msra.mxu0 0
  %106 = vmatpush.bf16.msra.mxu0 0
  %107 = vmatpush.bf16.msra.mxu0 0
  %108 = vmatpush.bf16.msra.mxu0 0
  %109 = vmatpush.bf16.msra.mxu0 %v96
  %110 = vmatpush.bf16.msra.mxu0 %v95
  %111 = vmatmul.bf16.gmra.mxu0 %v101
  %v112 = vpop.f32.mrf.mxu0
  %v113 = vadd.f32 0.0, %v112
  %v114 = vpop.f32.mrf.mxu0
  %115 = vdwg.mxu0
  %v116 = vadd.f32 %v86, %v113
  %v117 = vxor.u32 %v116, 2147483648
  %v118 = vmul.f32 %v117, 1.442695
  %v119 = vpow.pop %v118
  %v120 = vadd.f32 %v119, 1.0
  %v121 = vrcp.pop %v120
  %v122 = vmul.f32 %v120, %v121
  %v123 = vsub.f32 1.0, %v122
  %v124 = vmul.f32 %v121, %v123
  %v125 = vadd.f32 %v121, %v124
  %vm126 = vweird.f32 %v120
  %vm127 = vweird.f32 %v121
  %vm128 = vmor %vm126, %vm127
  %v129 = vsel %vm128, %v121, %v125
  %v130 = vand.u32 2147483647, %v120
  %vm131 = vcmp.eq.f32.partialorder %v130, 8.507059e+37
  %v132 = vand.u32 %v120, 2147483648
  %v133 = vor.u32 1.1754944e-38, %v132
  %v134 = vsel %vm131, %v133, %v129
  %v135 = vmul.f32 1.0, %v134
  %136 = vrot.lane.b32.xlu0 %v69, 64
  %v137 = vpop.permute.xlu0 %136
  %v139 = vadd.f32 %v113, %v137
  %141 = vrot.lane.b32.xlu0 %v139, 64
  %v142 = vpop.permute.xlu0 %141
  %v144 = vmul.f32 %v135, %v142
  %146 = vrot.lane.b32.xlu0 %v144, 64
  %v147 = vpop.permute.xlu0 %146
  %v149 = vadd.f32 %v86, %v147
  %v150 = vtanh.pop %v149
  %v151 = vsub.f32 1.0, %v135
  %153 = vrot.lane.b32.xlu0 %v150, 96
  %v154 = vpop.permute.xlu0 %153
  %v156 = vmul.f32 %v151, %v154
  %v157 = vmul.f32 %v135, 0.0
  %v158 = vadd.f32 %v156, %v157
  %v160 = vrot.slane %v59, 1
  %v162 = vsel %vm85, %v160, %v61
  %v163 = vpack.c.bf16 %v158, %v158
  %165 = vrot.lane.b32.xlu0 %v163, 96
  %v166 = vpop.permute.xlu0 %165
  %v168 = vsel %vm99, %v166, 0
  %170 = vmatpush.bf16.msra.mxu0 0
  %171 = vmatpush.bf16.msra.mxu0 0
  %172 = vmatpush.bf16.msra.mxu0 0
  %173 = vmatpush.bf16.msra.mxu0 0
  %174 = vmatpush.bf16.msra.mxu0 0
  %175 = vmatpush.bf16.msra.mxu0 0
  %176 = vmatpush.bf16.msra.mxu0 %v96
  %177 = vmatpush.bf16.msra.mxu0 %v95
  %178 = vmatmul.bf16.gmra.mxu0 %v168
  %v179 = vpop.f32.mrf.mxu0
  %v180 = vadd.f32 0.0, %v179
  %v181 = vpop.f32.mrf.mxu0
  %182 = vdwg.mxu0
  %v183 = vadd.f32 %v162, %v180
  %v184 = vxor.u32 %v183, 2147483648
  %v185 = vmul.f32 %v184, 1.442695
  %v186 = vpow.pop %v185
  %v187 = vadd.f32 %v186, 1.0
  %v188 = vrcp.pop %v187
  %v189 = vmul.f32 %v187, %v188
  %v190 = vsub.f32 1.0, %v189
  %v191 = vmul.f32 %v188, %v190
  %v192 = vadd.f32 %v188, %v191
  %vm193 = vweird.f32 %v187
  %vm194 = vweird.f32 %v188
  %vm195 = vmor %vm193, %vm194
  %v196 = vsel %vm195, %v188, %v192
  %v197 = vand.u32 2147483647, %v187
  %vm198 = vcmp.eq.f32.partialorder %v197, 8.507059e+37
  %v199 = vand.u32 %v187, 2147483648
  %v200 = vor.u32 1.1754944e-38, %v199
  %v201 = vsel %vm198, %v200, %v196
  %v202 = vmul.f32 1.0, %v201
  %v203 = vadd.f32 %v180, %v137
  %205 = vrot.lane.b32.xlu0 %v203, 64
  %v206 = vpop.permute.xlu0 %205
  %v208 = vmul.f32 %v202, %v206
  %210 = vrot.lane.b32.xlu0 %v208, 64
  %v211 = vpop.permute.xlu0 %210
  %v213 = vadd.f32 %v162, %v211
  %v214 = vtanh.pop %v213
  %v215 = vsub.f32 1.0, %v202
  %217 = vrot.lane.b32.xlu0 %v214, 96
  %v218 = vpop.permute.xlu0 %217
  %v220 = vmul.f32 %v215, %v218
  %v221 = vmul.f32 %v202, %v158
  %v222 = vadd.f32 %v220, %v221
  %224 = vrot.lane.b32.xlu0 %v158, 96
  %v225 = vpop.permute.xlu0 %224
  %v227 = vsel %vm99, %v225, 0.0
  %v228 = vpack.c.bf16 %v227, %v227
  %v237 = vunpack.c.l.b16 %v70
  %v238 = vunpack.c.l.b16 %v71
  %v239 = vunpack.c.l.b16 %v72
  %v240 = vunpack.c.l.b16 %v73
  %v241 = vunpack.c.l.b16 %v74
  %v242 = vunpack.c.l.b16 %v75
  %v243 = vunpack.c.l.b16 %v76
  %v244 = vunpack.c.l.b16 %v77
  %v245 = vpack.c.b16 %v238, %v237
  %v246 = vpack.c.b16 %v240, %v239
  %v247 = vpack.c.b16 %v242, %v241
  %v248 = vpack.c.b16 %v244, %v243
  %vm253 = vcmask 523264
  %v255 = vsel %vm253, %v228, 0
  %257 = vmatpush.bf16.msra.mxu0 0
  %258 = vmatpush.bf16.msra.mxu0 0
  %259 = vmatpush.bf16.msra.mxu0 0
  %260 = vmatpush.bf16.msra.mxu0 0
  %261 = vmatpush.bf16.msra.mxu0 %v248
  %262 = vmatpush.bf16.msra.mxu0 %v247
  %263 = vmatpush.bf16.msra.mxu0 %v246
  %264 = vmatpush.bf16.msra.mxu0 %v245
  %265 = vmatmul.bf16.gmra.mxu0 %v255
  %v266 = vpop.f32.mrf.mxu0
  %v267 = vadd.f32 %v80, %v266
  %v268 = vpop.f32.mrf.mxu0
  %269 = vdwg.mxu0
  %v270 = vxor.u32 %v267, 2147483648
  %v271 = vmul.f32 %v270, 1.442695
  %v272 = vpow.pop %v271
  %v273 = vadd.f32 %v272, 1.0
  %v274 = vrcp.pop %v273
  %v275 = vmul.f32 %v273, %v274
  %v276 = vsub.f32 1.0, %v275
  %v277 = vmul.f32 %v274, %v276
  %v278 = vadd.f32 %v274, %v277
  %vm279 = vweird.f32 %v273
  %vm280 = vweird.f32 %v274
  %vm281 = vmor %vm279, %vm280
  %v282 = vsel %vm281, %v274, %v278
  %v283 = vand.u32 2147483647, %v273
  %vm284 = vcmp.eq.f32.partialorder %v283, 8.507059e+37
  %v285 = vand.u32 %v273, 2147483648
  %v286 = vor.u32 1.1754944e-38, %v285
  %v287 = vsel %vm284, %v286, %v282
  %v288 = vmul.f32 1.0, %v287
  %290 = vrot.lane.b32.xlu0 %v267, 32
  %v291 = vpop.permute.xlu0 %290
  %v293 = vmul.f32 %v288, %v291
  %295 = vrot.lane.b32.xlu0 %v293, 64
  %v296 = vpop.permute.xlu0 %295
  %v298 = vadd.f32 %v267, %v296
  %v299 = vtanh.pop %v298
  %v300 = vsub.f32 1.0, %v288
  %302 = vrot.lane.b32.xlu0 %v299, 96
  %v303 = vpop.permute.xlu0 %302
  %v305 = vmul.f32 %v300, %v303
  %v306 = vmul.f32 %v288, 0.0
  %v307 = vadd.f32 %v305, %v306
  %309 = vrot.lane.b32.xlu0 %v307, 96
  %v310 = vpop.permute.xlu0 %309
  %vm312 = vcmask 253952
  %313 = vst.msk [vmem:[#allocation2] sm:$0x1] %vm312, %v310
  %vm314 = vcmask 254977
  %315 = vst.msk [vmem:[#allocation2 + $0x7] sm:$0x2] %vm314, %v310
  %v316 = vrot.slane %v59, 2
  %v318 = vrot.slane %v61, 1
  %v320 = vsel %vm85, %v316, %v318
  %v321 = vpack.c.bf16 %v222, %v222
  %323 = vrot.lane.b32.xlu0 %v321, 96
  %v324 = vpop.permute.xlu0 %323
  %v326 = vsel %vm99, %v324, 0
  %328 = vmatpush.bf16.msra.mxu0 0
  %329 = vmatpush.bf16.msra.mxu0 0
  %330 = vmatpush.bf16.msra.mxu0 0
  %331 = vmatpush.bf16.msra.mxu0 0
  %332 = vmatpush.bf16.msra.mxu0 0
  %333 = vmatpush.bf16.msra.mxu0 0
  %334 = vmatpush.bf16.msra.mxu0 %v96
  %335 = vmatpush.bf16.msra.mxu0 %v95
  %336 = vmatmul.bf16.gmra.mxu0 %v326
  %v337 = vpop.f32.mrf.mxu0
  %v338 = vadd.f32 0.0, %v337
  %v339 = vpop.f32.mrf.mxu0
  %340 = vdwg.mxu0
  %v341 = vadd.f32 %v320, %v338
  %v342 = vxor.u32 %v341, 2147483648
  %v343 = vmul.f32 %v342, 1.442695
  %v344 = vpow.pop %v343
  %v345 = vadd.f32 %v344, 1.0
  %v346 = vrcp.pop %v345
  %v347 = vmul.f32 %v345, %v346
  %v348 = vsub.f32 1.0, %v347
  %v349 = vmul.f32 %v346, %v348
  %v350 = vadd.f32 %v346, %v349
  %vm351 = vweird.f32 %v345
  %vm352 = vweird.f32 %v346
  %vm353 = vmor %vm351, %vm352
  %v354 = vsel %vm353, %v346, %v350
  %v355 = vand.u32 2147483647, %v345
  %vm356 = vcmp.eq.f32.partialorder %v355, 8.507059e+37
  %v357 = vand.u32 %v345, 2147483648
  %v358 = vor.u32 1.1754944e-38, %v357
  %v359 = vsel %vm356, %v358, %v354
  %v360 = vmul.f32 1.0, %v359
  %v361 = vadd.f32 %v338, %v137
  %363 = vrot.lane.b32.xlu0 %v361, 64
  %v364 = vpop.permute.xlu0 %363
  %v366 = vmul.f32 %v360, %v364
  %368 = vrot.lane.b32.xlu0 %v366, 64
  %v369 = vpop.permute.xlu0 %368
  %v371 = vadd.f32 %v320, %v369
  %v372 = vtanh.pop %v371
  %v373 = vsub.f32 1.0, %v360
  %375 = vrot.lane.b32.xlu0 %v372, 96
  %v376 = vpop.permute.xlu0 %375
  %v378 = vmul.f32 %v373, %v376
  %v379 = vmul.f32 %v360, %v222
  %v380 = vadd.f32 %v378, %v379
  %382 = vrot.lane.b32.xlu0 %v222, 96
  %v383 = vpop.permute.xlu0 %382
  %v385 = vsel %vm99, %v383, %v307
  %v386 = vpack.c.bf16 %v385, %v385
  %v388 = vsel %vm253, %v386, 0
  %390 = vmatpush.bf16.msra.mxu0 0
  %391 = vmatpush.bf16.msra.mxu0 0
  %392 = vmatpush.bf16.msra.mxu0 0
  %393 = vmatpush.bf16.msra.mxu0 0
  %394 = vmatpush.bf16.msra.mxu0 %v248
  %395 = vmatpush.bf16.msra.mxu0 %v247
  %396 = vmatpush.bf16.msra.mxu0 %v246
  %397 = vmatpush.bf16.msra.mxu0 %v245
  %398 = vmatmul.bf16.gmra.mxu0 %v388
  %v399 = vpop.f32.mrf.mxu0
  %v400 = vadd.f32 %v80, %v399
  %v401 = vpop.f32.mrf.mxu0
  %402 = vdwg.mxu0
  %v403 = vxor.u32 %v400, 2147483648
  %v404 = vmul.f32 %v403, 1.442695
  %v405 = vpow.pop %v404
  %v406 = vadd.f32 %v405, 1.0
  %v407 = vrcp.pop %v406
  %v408 = vmul.f32 %v406, %v407
  %v409 = vsub.f32 1.0, %v408
  %v410 = vmul.f32 %v407, %v409
  %v411 = vadd.f32 %v407, %v410
  %vm412 = vweird.f32 %v406
  %vm413 = vweird.f32 %v407
  %vm414 = vmor %vm412, %vm413
  %v415 = vsel %vm414, %v407, %v411
  %v416 = vand.u32 2147483647, %v406
  %vm417 = vcmp.eq.f32.partialorder %v416, 8.507059e+37
  %v418 = vand.u32 %v406, 2147483648
  %v419 = vor.u32 1.1754944e-38, %v418
  %v420 = vsel %vm417, %v419, %v415
  %v421 = vmul.f32 1.0, %v420
  %423 = vrot.lane.b32.xlu0 %v400, 32
  %v424 = vpop.permute.xlu0 %423
  %v426 = vmul.f32 %v421, %v424
  %428 = vrot.lane.b32.xlu0 %v426, 64
  %v429 = vpop.permute.xlu0 %428
  %v431 = vadd.f32 %v400, %v429
  %v432 = vtanh.pop %v431
  %v433 = vsub.f32 1.0, %v421
  %435 = vrot.lane.b32.xlu0 %v432, 96
  %v436 = vpop.permute.xlu0 %435
  %v438 = vmul.f32 %v433, %v436
  %v439 = vmul.f32 %v421, %v307
  %v440 = vadd.f32 %v438, %v439
  %442 = vrot.lane.b32.xlu0 %v440, 96
  %v443 = vpop.permute.xlu0 %442
  %445 = vst.msk [vmem:[#allocation2 + $0x1] sm:$0x1] %vm312, %v443
  %446 = vst.msk [vmem:[#allocation2 + $0x8] sm:$0x2] %vm314, %v443
  %v447 = vrot.slane %v59, 3
  %v449 = vrot.slane %v61, 2
  %v451 = vsel %vm85, %v447, %v449
  %v452 = vpack.c.bf16 %v380, %v380
  %454 = vrot.lane.b32.xlu0 %v452, 96
  %v455 = vpop.permute.xlu0 %454
  %v457 = vsel %vm99, %v455, 0
  %459 = vmatpush.bf16.msra.mxu0 0
  %460 = vmatpush.bf16.msra.mxu0 0
  %461 = vmatpush.bf16.msra.mxu0 0
  %462 = vmatpush.bf16.msra.mxu0 0
  %463 = vmatpush.bf16.msra.mxu0 0
  %464 = vmatpush.bf16.msra.mxu0 0
  %465 = vmatpush.bf16.msra.mxu0 %v96
  %466 = vmatpush.bf16.msra.mxu0 %v95
  %467 = vmatmul.bf16.gmra.mxu0 %v457
  %v468 = vpop.f32.mrf.mxu0
  %v469 = vadd.f32 0.0, %v468
  %v470 = vpop.f32.mrf.mxu0
  %471 = vdwg.mxu0
  %v472 = vadd.f32 %v451, %v469
  %v473 = vxor.u32 %v472, 2147483648
  %v474 = vmul.f32 %v473, 1.442695
  %v475 = vpow.pop %v474
  %v476 = vadd.f32 %v475, 1.0
  %v477 = vrcp.pop %v476
  %v478 = vmul.f32 %v476, %v477
  %v479 = vsub.f32 1.0, %v478
  %v480 = vmul.f32 %v477, %v479
  %v481 = vadd.f32 %v477, %v480
  %vm482 = vweird.f32 %v476
  %vm483 = vweird.f32 %v477
  %vm484 = vmor %vm482, %vm483
  %v485 = vsel %vm484, %v477, %v481
  %v486 = vand.u32 2147483647, %v476
  %vm487 = vcmp.eq.f32.partialorder %v486, 8.507059e+37
  %v488 = vand.u32 %v476, 2147483648
  %v489 = vor.u32 1.1754944e-38, %v488
  %v490 = vsel %vm487, %v489, %v485
  %v491 = vmul.f32 1.0, %v490
  %v492 = vadd.f32 %v469, %v137
  %494 = vrot.lane.b32.xlu0 %v492, 64
  %v495 = vpop.permute.xlu0 %494
  %v497 = vmul.f32 %v491, %v495
  %499 = vrot.lane.b32.xlu0 %v497, 64
  %v500 = vpop.permute.xlu0 %499
  %v502 = vadd.f32 %v451, %v500
  %v503 = vtanh.pop %v502
  %v504 = vsub.f32 1.0, %v491
  %506 = vrot.lane.b32.xlu0 %v503, 96
  %v507 = vpop.permute.xlu0 %506
  %v509 = vmul.f32 %v504, %v507
  %v510 = vmul.f32 %v491, %v380
  %v511 = vadd.f32 %v509, %v510
  %513 = vrot.lane.b32.xlu0 %v380, 96
  %v514 = vpop.permute.xlu0 %513
  %v516 = vsel %vm99, %v514, %v440
  %v517 = vpack.c.bf16 %v516, %v516
  %v519 = vsel %vm253, %v517, 0
  %521 = vmatpush.bf16.msra.mxu0 0
  %522 = vmatpush.bf16.msra.mxu0 0
  %523 = vmatpush.bf16.msra.mxu0 0
  %524 = vmatpush.bf16.msra.mxu0 0
  %525 = vmatpush.bf16.msra.mxu0 %v248
  %526 = vmatpush.bf16.msra.mxu0 %v247
  %527 = vmatpush.bf16.msra.mxu0 %v246
  %528 = vmatpush.bf16.msra.mxu0 %v245
  %529 = vmatmul.bf16.gmra.mxu0 %v519
  %v530 = vpop.f32.mrf.mxu0
  %v531 = vadd.f32 %v80, %v530
  %v532 = vpop.f32.mrf.mxu0
  %533 = vdwg.mxu0
  %v534 = vxor.u32 %v531, 2147483648
  %v535 = vmul.f32 %v534, 1.442695
  %v536 = vpow.pop %v535
  %v537 = vadd.f32 %v536, 1.0
  %v538 = vrcp.pop %v537
  %v539 = vmul.f32 %v537, %v538
  %v540 = vsub.f32 1.0, %v539
  %v541 = vmul.f32 %v538, %v540
  %v542 = vadd.f32 %v538, %v541
  %vm543 = vweird.f32 %v537
  %vm544 = vweird.f32 %v538
  %vm545 = vmor %vm543, %vm544
  %v546 = vsel %vm545, %v538, %v542
  %v547 = vand.u32 2147483647, %v537
  %vm548 = vcmp.eq.f32.partialorder %v547, 8.507059e+37
  %v549 = vand.u32 %v537, 2147483648
  %v550 = vor.u32 1.1754944e-38, %v549
  %v551 = vsel %vm548, %v550, %v546
  %v552 = vmul.f32 1.0, %v551
  %554 = vrot.lane.b32.xlu0 %v531, 32
  %v555 = vpop.permute.xlu0 %554
  %v557 = vmul.f32 %v552, %v555
  %559 = vrot.lane.b32.xlu0 %v557, 64
  %v560 = vpop.permute.xlu0 %559
  %v562 = vadd.f32 %v531, %v560
  %v563 = vtanh.pop %v562
  %v564 = vsub.f32 1.0, %v552
  %566 = vrot.lane.b32.xlu0 %v563, 96
  %v567 = vpop.permute.xlu0 %566
  %v569 = vmul.f32 %v564, %v567
  %v570 = vmul.f32 %v552, %v440
  %v571 = vadd.f32 %v569, %v570
  %573 = vrot.lane.b32.xlu0 %v571, 96
  %v574 = vpop.permute.xlu0 %573
  %576 = vst.msk [vmem:[#allocation2 + $0x2] sm:$0x1] %vm312, %v574
  %577 = vst.msk [vmem:[#allocation2 + $0x9] sm:$0x2] %vm314, %v574
  %v578 = vrot.slane %v59, 4
  %v580 = vrot.slane %v61, 3
  %v582 = vsel %vm85, %v578, %v580
  %v583 = vpack.c.bf16 %v511, %v511
  %585 = vrot.lane.b32.xlu0 %v583, 96
  %v586 = vpop.permute.xlu0 %585
  %v588 = vsel %vm99, %v586, 0
  %590 = vmatpush.bf16.msra.mxu0 0
  %591 = vmatpush.bf16.msra.mxu0 0
  %592 = vmatpush.bf16.msra.mxu0 0
  %593 = vmatpush.bf16.msra.mxu0 0
  %594 = vmatpush.bf16.msra.mxu0 0
  %595 = vmatpush.bf16.msra.mxu0 0
  %596 = vmatpush.bf16.msra.mxu0 %v96
  %597 = vmatpush.bf16.msra.mxu0 %v95
  %598 = vmatmul.bf16.gmra.mxu0 %v588
  %v599 = vpop.f32.mrf.mxu0
  %v600 = vadd.f32 0.0, %v599
  %v601 = vpop.f32.mrf.mxu0
  %602 = vdwg.mxu0
  %v603 = vadd.f32 %v582, %v600
  %v604 = vxor.u32 %v603, 2147483648
  %v605 = vmul.f32 %v604, 1.442695
  %v606 = vpow.pop %v605
  %v607 = vadd.f32 %v606, 1.0
  %v608 = vrcp.pop %v607
  %v609 = vmul.f32 %v607, %v608
  %v610 = vsub.f32 1.0, %v609
  %v611 = vmul.f32 %v608, %v610
  %v612 = vadd.f32 %v608, %v611
  %vm613 = vweird.f32 %v607
  %vm614 = vweird.f32 %v608
  %vm615 = vmor %vm613, %vm614
  %v616 = vsel %vm615, %v608, %v612
  %v617 = vand.u32 2147483647, %v607
  %vm618 = vcmp.eq.f32.partialorder %v617, 8.507059e+37
  %v619 = vand.u32 %v607, 2147483648
  %v620 = vor.u32 1.1754944e-38, %v619
  %v621 = vsel %vm618, %v620, %v616
  %v622 = vmul.f32 1.0, %v621
  %v623 = vadd.f32 %v600, %v137
  %625 = vrot.lane.b32.xlu0 %v623, 64
  %v626 = vpop.permute.xlu0 %625
  %v628 = vmul.f32 %v622, %v626
  %630 = vrot.lane.b32.xlu0 %v628, 64
  %v631 = vpop.permute.xlu0 %630
  %v633 = vadd.f32 %v582, %v631
  %v634 = vtanh.pop %v633
  %v635 = vsub.f32 1.0, %v622
  %637 = vrot.lane.b32.xlu0 %v634, 96
  %v638 = vpop.permute.xlu0 %637
  %v640 = vmul.f32 %v635, %v638
  %v641 = vmul.f32 %v622, %v511
  %v642 = vadd.f32 %v640, %v641
  %644 = vrot.lane.b32.xlu0 %v511, 96
  %v645 = vpop.permute.xlu0 %644
  %v647 = vsel %vm99, %v645, %v571
  %v648 = vpack.c.bf16 %v647, %v647
  %v650 = vsel %vm253, %v648, 0
  %652 = vmatpush.bf16.msra.mxu0 0
  %653 = vmatpush.bf16.msra.mxu0 0
  %654 = vmatpush.bf16.msra.mxu0 0
  %655 = vmatpush.bf16.msra.mxu0 0
  %656 = vmatpush.bf16.msra.mxu0 %v248
  %657 = vmatpush.bf16.msra.mxu0 %v247
  %658 = vmatpush.bf16.msra.mxu0 %v246
  %659 = vmatpush.bf16.msra.mxu0 %v245
  %660 = vmatmul.bf16.gmra.mxu0 %v650
  %v661 = vpop.f32.mrf.mxu0
  %v662 = vadd.f32 %v80, %v661
  %v663 = vpop.f32.mrf.mxu0
  %664 = vdwg.mxu0
  %v665 = vxor.u32 %v662, 2147483648
  %v666 = vmul.f32 %v665, 1.442695
  %v667 = vpow.pop %v666
  %v668 = vadd.f32 %v667, 1.0
  %v669 = vrcp.pop %v668
  %v670 = vmul.f32 %v668, %v669
  %v671 = vsub.f32 1.0, %v670
  %v672 = vmul.f32 %v669, %v671
  %v673 = vadd.f32 %v669, %v672
  %vm674 = vweird.f32 %v668
  %vm675 = vweird.f32 %v669
  %vm676 = vmor %vm674, %vm675
  %v677 = vsel %vm676, %v669, %v673
  %v678 = vand.u32 2147483647, %v668
  %vm679 = vcmp.eq.f32.partialorder %v678, 8.507059e+37
  %v680 = vand.u32 %v668, 2147483648
  %v681 = vor.u32 1.1754944e-38, %v680
  %v682 = vsel %vm679, %v681, %v677
  %v683 = vmul.f32 1.0, %v682
  %685 = vrot.lane.b32.xlu0 %v662, 32
  %v686 = vpop.permute.xlu0 %685
  %v688 = vmul.f32 %v683, %v686
  %690 = vrot.lane.b32.xlu0 %v688, 64
  %v691 = vpop.permute.xlu0 %690
  %v693 = vadd.f32 %v662, %v691
  %v694 = vtanh.pop %v693
  %v695 = vsub.f32 1.0, %v683
  %697 = vrot.lane.b32.xlu0 %v694, 96
  %v698 = vpop.permute.xlu0 %697
  %v700 = vmul.f32 %v695, %v698
  %v701 = vmul.f32 %v683, %v571
  %v702 = vadd.f32 %v700, %v701
  %704 = vrot.lane.b32.xlu0 %v702, 96
  %v705 = vpop.permute.xlu0 %704
  %707 = vst.msk [vmem:[#allocation2 + $0x3] sm:$0x1] %vm312, %v705
  %708 = vst.msk [vmem:[#allocation2 + $0xa] sm:$0x2] %vm314, %v705
  %v709 = vrot.slane %v59, 5
  %v711 = vrot.slane %v61, 4
  %v713 = vsel %vm85, %v709, %v711
  %v714 = vpack.c.bf16 %v642, %v642
  %716 = vrot.lane.b32.xlu0 %v714, 96
  %v717 = vpop.permute.xlu0 %716
  %v719 = vsel %vm99, %v717, 0
  %721 = vmatpush.bf16.msra.mxu0 0
  %722 = vmatpush.bf16.msra.mxu0 0
  %723 = vmatpush.bf16.msra.mxu0 0
  %724 = vmatpush.bf16.msra.mxu0 0
  %725 = vmatpush.bf16.msra.mxu0 0
  %726 = vmatpush.bf16.msra.mxu0 0
  %727 = vmatpush.bf16.msra.mxu0 %v96
  %728 = vmatpush.bf16.msra.mxu0 %v95
  %729 = vmatmul.bf16.gmra.mxu0 %v719
  %v730 = vpop.f32.mrf.mxu0
  %v731 = vadd.f32 0.0, %v730
  %v732 = vpop.f32.mrf.mxu0
  %733 = vdwg.mxu0
  %v734 = vadd.f32 %v713, %v731
  %v735 = vxor.u32 %v734, 2147483648
  %v736 = vmul.f32 %v735, 1.442695
  %v737 = vpow.pop %v736
  %v738 = vadd.f32 %v737, 1.0
  %v739 = vrcp.pop %v738
  %v740 = vmul.f32 %v738, %v739
  %v741 = vsub.f32 1.0, %v740
  %v742 = vmul.f32 %v739, %v741
  %v743 = vadd.f32 %v739, %v742
  %vm744 = vweird.f32 %v738
  %vm745 = vweird.f32 %v739
  %vm746 = vmor %vm744, %vm745
  %v747 = vsel %vm746, %v739, %v743
  %v748 = vand.u32 2147483647, %v738
  %vm749 = vcmp.eq.f32.partialorder %v748, 8.507059e+37
  %v750 = vand.u32 %v738, 2147483648
  %v751 = vor.u32 1.1754944e-38, %v750
  %v752 = vsel %vm749, %v751, %v747
  %v753 = vmul.f32 1.0, %v752
  %v754 = vadd.f32 %v731, %v137
  %756 = vrot.lane.b32.xlu0 %v754, 64
  %v757 = vpop.permute.xlu0 %756
  %v759 = vmul.f32 %v753, %v757
  %761 = vrot.lane.b32.xlu0 %v759, 64
  %v762 = vpop.permute.xlu0 %761
  %v764 = vadd.f32 %v713, %v762
  %v765 = vtanh.pop %v764
  %v766 = vsub.f32 1.0, %v753
  %768 = vrot.lane.b32.xlu0 %v765, 96
  %v769 = vpop.permute.xlu0 %768
  %v771 = vmul.f32 %v766, %v769
  %v772 = vmul.f32 %v753, %v642
  %v773 = vadd.f32 %v771, %v772
  %775 = vrot.lane.b32.xlu0 %v642, 96
  %v776 = vpop.permute.xlu0 %775
  %v778 = vsel %vm99, %v776, %v702
  %v779 = vpack.c.bf16 %v778, %v778
  %v781 = vsel %vm253, %v779, 0
  %783 = vmatpush.bf16.msra.mxu0 0
  %784 = vmatpush.bf16.msra.mxu0 0
  %785 = vmatpush.bf16.msra.mxu0 0
  %786 = vmatpush.bf16.msra.mxu0 0
  %787 = vmatpush.bf16.msra.mxu0 %v248
  %788 = vmatpush.bf16.msra.mxu0 %v247
  %789 = vmatpush.bf16.msra.mxu0 %v246
  %790 = vmatpush.bf16.msra.mxu0 %v245
  %791 = vmatmul.bf16.gmra.mxu0 %v781
  %v792 = vpop.f32.mrf.mxu0
  %v793 = vadd.f32 %v80, %v792
  %v794 = vpop.f32.mrf.mxu0
  %795 = vdwg.mxu0
  %v796 = vxor.u32 %v793, 2147483648
  %v797 = vmul.f32 %v796, 1.442695
  %v798 = vpow.pop %v797
  %v799 = vadd.f32 %v798, 1.0
  %v800 = vrcp.pop %v799
  %v801 = vmul.f32 %v799, %v800
  %v802 = vsub.f32 1.0, %v801
  %v803 = vmul.f32 %v800, %v802
  %v804 = vadd.f32 %v800, %v803
  %vm805 = vweird.f32 %v799
  %vm806 = vweird.f32 %v800
  %vm807 = vmor %vm805, %vm806
  %v808 = vsel %vm807, %v800, %v804
  %v809 = vand.u32 2147483647, %v799
  %vm810 = vcmp.eq.f32.partialorder %v809, 8.507059e+37
  %v811 = vand.u32 %v799, 2147483648
  %v812 = vor.u32 1.1754944e-38, %v811
  %v813 = vsel %vm810, %v812, %v808
  %v814 = vmul.f32 1.0, %v813
  %816 = vrot.lane.b32.xlu0 %v793, 32
  %v817 = vpop.permute.xlu0 %816
  %v819 = vmul.f32 %v814, %v817
  %821 = vrot.lane.b32.xlu0 %v819, 64
  %v822 = vpop.permute.xlu0 %821
  %v824 = vadd.f32 %v793, %v822
  %v825 = vtanh.pop %v824
  %v826 = vsub.f32 1.0, %v814
  %828 = vrot.lane.b32.xlu0 %v825, 96
  %v829 = vpop.permute.xlu0 %828
  %v831 = vmul.f32 %v826, %v829
  %v832 = vmul.f32 %v814, %v702
  %v833 = vadd.f32 %v831, %v832
  %835 = vrot.lane.b32.xlu0 %v833, 96
  %v836 = vpop.permute.xlu0 %835
  %838 = vst.msk [vmem:[#allocation2 + $0x4] sm:$0x1] %vm312, %v836
  %839 = vst.msk [vmem:[#allocation2 + $0xb] sm:$0x2] %vm314, %v836
  %v840 = vrot.slane %v59, 6
  %v842 = vrot.slane %v61, 5
  %v844 = vsel %vm85, %v840, %v842
  %v845 = vpack.c.bf16 %v773, %v773
  %847 = vrot.lane.b32.xlu0 %v845, 96
  %v848 = vpop.permute.xlu0 %847
  %v850 = vsel %vm99, %v848, 0
  %852 = vmatpush.bf16.msra.mxu0 0
  %853 = vmatpush.bf16.msra.mxu0 0
  %854 = vmatpush.bf16.msra.mxu0 0
  %855 = vmatpush.bf16.msra.mxu0 0
  %856 = vmatpush.bf16.msra.mxu0 0
  %857 = vmatpush.bf16.msra.mxu0 0
  %858 = vmatpush.bf16.msra.mxu0 %v96
  %859 = vmatpush.bf16.msra.mxu0 %v95
  %860 = vmatmul.bf16.gmra.mxu0 %v850
  %v861 = vpop.f32.mrf.mxu0
  %v862 = vadd.f32 0.0, %v861
  %v863 = vpop.f32.mrf.mxu0
  %864 = vdwg.mxu0
  %v865 = vadd.f32 %v844, %v862
  %v866 = vxor.u32 %v865, 2147483648
  %v867 = vmul.f32 %v866, 1.442695
  %v868 = vpow.pop %v867
  %v869 = vadd.f32 %v868, 1.0
  %v870 = vrcp.pop %v869
  %v871 = vmul.f32 %v869, %v870
  %v872 = vsub.f32 1.0, %v871
  %v873 = vmul.f32 %v870, %v872
  %v874 = vadd.f32 %v870, %v873
  %vm875 = vweird.f32 %v869
  %vm876 = vweird.f32 %v870
  %vm877 = vmor %vm875, %vm876
  %v878 = vsel %vm877, %v870, %v874
  %v879 = vand.u32 2147483647, %v869
  %vm880 = vcmp.eq.f32.partialorder %v879, 8.507059e+37
  %v881 = vand.u32 %v869, 2147483648
  %v882 = vor.u32 1.1754944e-38, %v881
  %v883 = vsel %vm880, %v882, %v878
  %v884 = vmul.f32 1.0, %v883
  %v885 = vadd.f32 %v862, %v137
  %887 = vrot.lane.b32.xlu0 %v885, 64
  %v888 = vpop.permute.xlu0 %887
  %v890 = vmul.f32 %v884, %v888
  %892 = vrot.lane.b32.xlu0 %v890, 64
  %v893 = vpop.permute.xlu0 %892
  %v895 = vadd.f32 %v844, %v893
  %v896 = vtanh.pop %v895
  %v897 = vsub.f32 1.0, %v884
  %899 = vrot.lane.b32.xlu0 %v896, 96
  %v900 = vpop.permute.xlu0 %899
  %v902 = vmul.f32 %v897, %v900
  %v903 = vmul.f32 %v884, %v773
  %v904 = vadd.f32 %v902, %v903
  %906 = vrot.lane.b32.xlu0 %v773, 96
  %v907 = vpop.permute.xlu0 %906
  %v909 = vsel %vm99, %v907, %v833
  %v910 = vpack.c.bf16 %v909, %v909
  %v912 = vsel %vm253, %v910, 0
  %914 = vmatpush.bf16.msra.mxu0 0
  %915 = vmatpush.bf16.msra.mxu0 0
  %916 = vmatpush.bf16.msra.mxu0 0
  %917 = vmatpush.bf16.msra.mxu0 0
  %918 = vmatpush.bf16.msra.mxu0 %v248
  %919 = vmatpush.bf16.msra.mxu0 %v247
  %920 = vmatpush.bf16.msra.mxu0 %v246
  %921 = vmatpush.bf16.msra.mxu0 %v245
  %922 = vmatmul.bf16.gmra.mxu0 %v912
  %v923 = vpop.f32.mrf.mxu0
  %v924 = vadd.f32 %v80, %v923
  %v925 = vpop.f32.mrf.mxu0
  %926 = vdwg.mxu0
  %v927 = vxor.u32 %v924, 2147483648
  %v928 = vmul.f32 %v927, 1.442695
  %v929 = vpow.pop %v928
  %v930 = vadd.f32 %v929, 1.0
  %v931 = vrcp.pop %v930
  %v932 = vmul.f32 %v930, %v931
  %v933 = vsub.f32 1.0, %v932
  %v934 = vmul.f32 %v931, %v933
  %v935 = vadd.f32 %v931, %v934
  %vm936 = vweird.f32 %v930
  %vm937 = vweird.f32 %v931
  %vm938 = vmor %vm936, %vm937
  %v939 = vsel %vm938, %v931, %v935
  %v940 = vand.u32 2147483647, %v930
  %vm941 = vcmp.eq.f32.partialorder %v940, 8.507059e+37
  %v942 = vand.u32 %v930, 2147483648
  %v943 = vor.u32 1.1754944e-38, %v942
  %v944 = vsel %vm941, %v943, %v939
  %v945 = vmul.f32 1.0, %v944
  %947 = vrot.lane.b32.xlu0 %v924, 32
  %v948 = vpop.permute.xlu0 %947
  %v950 = vmul.f32 %v945, %v948
  %952 = vrot.lane.b32.xlu0 %v950, 64
  %v953 = vpop.permute.xlu0 %952
  %v955 = vadd.f32 %v924, %v953
  %v956 = vtanh.pop %v955
  %v957 = vsub.f32 1.0, %v945
  %959 = vrot.lane.b32.xlu0 %v956, 96
  %v960 = vpop.permute.xlu0 %959
  %v962 = vmul.f32 %v957, %v960
  %v963 = vmul.f32 %v945, %v833
  %v964 = vadd.f32 %v962, %v963
  %966 = vrot.lane.b32.xlu0 %v964, 96
  %v967 = vpop.permute.xlu0 %966
  %969 = vst.msk [vmem:[#allocation2 + $0x5] sm:$0x1] %vm312, %v967
  %970 = vst.msk [vmem:[#allocation2 + $0xc] sm:$0x2] %vm314, %v967
  %v971 = vrot.slane %v59, 7
  %v973 = vrot.slane %v61, 6
  %v975 = vsel %vm85, %v971, %v973
  %v976 = vpack.c.bf16 %v904, %v904
  %978 = vrot.lane.b32.xlu0 %v976, 96
  %v979 = vpop.permute.xlu0 %978
  %v981 = vsel %vm99, %v979, 0
  %983 = vmatpush.bf16.msra.mxu0 0
  %984 = vmatpush.bf16.msra.mxu0 0
  %985 = vmatpush.bf16.msra.mxu0 0
  %986 = vmatpush.bf16.msra.mxu0 0
  %987 = vmatpush.bf16.msra.mxu0 0
  %988 = vmatpush.bf16.msra.mxu0 0
  %989 = vmatpush.bf16.msra.mxu0 %v96
  %990 = vmatpush.bf16.msra.mxu0 %v95
  %991 = vmatmul.bf16.gmra.mxu0 %v981
  %v992 = vpop.f32.mrf.mxu0
  %v993 = vadd.f32 0.0, %v992
  %v994 = vpop.f32.mrf.mxu0
  %995 = vdwg.mxu0
  %v996 = vadd.f32 %v975, %v993
  %v997 = vxor.u32 %v996, 2147483648
  %v998 = vmul.f32 %v997, 1.442695
  %v999 = vpow.pop %v998
  %v1000 = vadd.f32 %v999, 1.0
  %v1001 = vrcp.pop %v1000
  %v1002 = vmul.f32 %v1000, %v1001
  %v1003 = vsub.f32 1.0, %v1002
  %v1004 = vmul.f32 %v1001, %v1003
  %v1005 = vadd.f32 %v1001, %v1004
  %vm1006 = vweird.f32 %v1000
  %vm1007 = vweird.f32 %v1001
  %vm1008 = vmor %vm1006, %vm1007
  %v1009 = vsel %vm1008, %v1001, %v1005
  %v1010 = vand.u32 2147483647, %v1000
  %vm1011 = vcmp.eq.f32.partialorder %v1010, 8.507059e+37
  %v1012 = vand.u32 %v1000, 2147483648
  %v1013 = vor.u32 1.1754944e-38, %v1012
  %v1014 = vsel %vm1011, %v1013, %v1009
  %v1015 = vmul.f32 1.0, %v1014
  %v1016 = vadd.f32 %v993, %v137
  %1018 = vrot.lane.b32.xlu0 %v1016, 64
  %v1019 = vpop.permute.xlu0 %1018
  %v1021 = vmul.f32 %v1015, %v1019
  %1023 = vrot.lane.b32.xlu0 %v1021, 64
  %v1024 = vpop.permute.xlu0 %1023
  %v1026 = vadd.f32 %v975, %v1024
  %v1027 = vtanh.pop %v1026
  %v1028 = vsub.f32 1.0, %v1015
  %1030 = vrot.lane.b32.xlu0 %v1027, 96
  %v1031 = vpop.permute.xlu0 %1030
  %v1033 = vmul.f32 %v1028, %v1031
  %v1034 = vmul.f32 %v1015, %v904
  %v1035 = vadd.f32 %v1033, %v1034
  %1037 = vrot.lane.b32.xlu0 %v904, 96
  %v1038 = vpop.permute.xlu0 %1037
  %v1040 = vsel %vm99, %v1038, %v964
  %v1041 = vpack.c.bf16 %v1040, %v1040
  %v1043 = vsel %vm253, %v1041, 0
  %1045 = vmatpush.bf16.msra.mxu0 0
  %1046 = vmatpush.bf16.msra.mxu0 0
  %1047 = vmatpush.bf16.msra.mxu0 0
  %1048 = vmatpush.bf16.msra.mxu0 0
  %1049 = vmatpush.bf16.msra.mxu0 %v248
  %1050 = vmatpush.bf16.msra.mxu0 %v247
  %1051 = vmatpush.bf16.msra.mxu0 %v246
  %1052 = vmatpush.bf16.msra.mxu0 %v245
  %1053 = vmatmul.bf16.gmra.mxu0 %v1043
  %v1054 = vpop.f32.mrf.mxu0
  %v1055 = vadd.f32 %v80, %v1054
  %v1056 = vpop.f32.mrf.mxu0
  %1057 = vdwg.mxu0
  %v1058 = vxor.u32 %v1055, 2147483648
  %v1059 = vmul.f32 %v1058, 1.442695
  %v1060 = vpow.pop %v1059
  %v1061 = vadd.f32 %v1060, 1.0
  %v1062 = vrcp.pop %v1061
  %v1063 = vmul.f32 %v1061, %v1062
  %v1064 = vsub.f32 1.0, %v1063
  %v1065 = vmul.f32 %v1062, %v1064
  %v1066 = vadd.f32 %v1062, %v1065
  %vm1067 = vweird.f32 %v1061
  %vm1068 = vweird.f32 %v1062
  %vm1069 = vmor %vm1067, %vm1068
  %v1070 = vsel %vm1069, %v1062, %v1066
  %v1071 = vand.u32 2147483647, %v1061
  %vm1072 = vcmp.eq.f32.partialorder %v1071, 8.507059e+37
  %v1073 = vand.u32 %v1061, 2147483648
  %v1074 = vor.u32 1.1754944e-38, %v1073
  %v1075 = vsel %vm1072, %v1074, %v1070
  %v1076 = vmul.f32 1.0, %v1075
  %1078 = vrot.lane.b32.xlu0 %v1055, 32
  %v1079 = vpop.permute.xlu0 %1078
  %v1081 = vmul.f32 %v1076, %v1079
  %1083 = vrot.lane.b32.xlu0 %v1081, 64
  %v1084 = vpop.permute.xlu0 %1083
  %v1086 = vadd.f32 %v1055, %v1084
  %v1087 = vtanh.pop %v1086
  %v1088 = vsub.f32 1.0, %v1076
  %1090 = vrot.lane.b32.xlu0 %v1087, 96
  %v1091 = vpop.permute.xlu0 %1090
  %v1093 = vmul.f32 %v1088, %v1091
  %v1094 = vmul.f32 %v1076, %v964
  %v1095 = vadd.f32 %v1093, %v1094
  %1097 = vrot.lane.b32.xlu0 %v1095, 96
  %v1098 = vpop.permute.xlu0 %1097
  %1100 = vst.msk [vmem:[#allocation2 + $0x6] sm:$0x1] %vm312, %v1098
  %1101 = vst.msk [vmem:[#allocation2 + $0xd] sm:$0x2] %vm314, %v1098
  %1103 = vrot.lane.b32.xlu0 %v1035, 96
  %v1104 = vpop.permute.xlu0 %1103
  %v1106 = vsel %vm99, %v1104, %v1095
  %v1107 = vpack.c.bf16 %v1106, %v1106
  %v1109 = vsel %vm253, %v1107, 0
  %1111 = vmatpush.bf16.msra.mxu0 0
  %1112 = vmatpush.bf16.msra.mxu0 0
  %1113 = vmatpush.bf16.msra.mxu0 0
  %1114 = vmatpush.bf16.msra.mxu0 0
  %1115 = vmatpush.bf16.msra.mxu0 %v248
  %1116 = vmatpush.bf16.msra.mxu0 %v247
  %1117 = vmatpush.bf16.msra.mxu0 %v246
  %1118 = vmatpush.bf16.msra.mxu0 %v245
  %1119 = vmatmul.bf16.gmra.mxu0 %v1109
  %v1120 = vpop.f32.mrf.mxu0
  %v1121 = vadd.f32 %v80, %v1120
  %v1122 = vpop.f32.mrf.mxu0
  %1123 = vdwg.mxu0
  %v1124 = vxor.u32 %v1121, 2147483648
  %v1125 = vmul.f32 %v1124, 1.442695
  %v1126 = vpow.pop %v1125
  %v1127 = vadd.f32 %v1126, 1.0
  %v1128 = vrcp.pop %v1127
  %v1129 = vmul.f32 %v1127, %v1128
  %v1130 = vsub.f32 1.0, %v1129
  %v1131 = vmul.f32 %v1128, %v1130
  %v1132 = vadd.f32 %v1128, %v1131
  %vm1133 = vweird.f32 %v1127
  %vm1134 = vweird.f32 %v1128
  %vm1135 = vmor %vm1133, %vm1134
  %v1136 = vsel %vm1135, %v1128, %v1132
  %v1137 = vand.u32 2147483647, %v1127
  %vm1138 = vcmp.eq.f32.partialorder %v1137, 8.507059e+37
  %v1139 = vand.u32 %v1127, 2147483648
  %v1140 = vor.u32 1.1754944e-38, %v1139
  %v1141 = vsel %vm1138, %v1140, %v1136
  %v1142 = vmul.f32 1.0, %v1141
  %1144 = vrot.lane.b32.xlu0 %v1121, 32
  %v1145 = vpop.permute.xlu0 %1144
  %v1147 = vmul.f32 %v1142, %v1145
  %1149 = vrot.lane.b32.xlu0 %v1147, 64
  %v1150 = vpop.permute.xlu0 %1149
  %v1152 = vadd.f32 %v1121, %v1150
  %v1153 = vtanh.pop %v1152
  %v1154 = vsub.f32 1.0, %v1142
  %1156 = vrot.lane.b32.xlu0 %v1153, 96
  %v1157 = vpop.permute.xlu0 %1156
  %v1159 = vmul.f32 %v1154, %v1157
  %v1160 = vmul.f32 %v1142, %v1095
  %v1161 = vadd.f32 %v1159, %v1160
  %1163 = vrot.lane.b32.xlu0 %v1161, 96
  %v1164 = vpop.permute.xlu0 %1163
  %1166 = vst.msk [vmem:[#allocation2 + $0x7] sm:$0x1] %vm312, %v1164
  %1167 = vst.msk [vmem:[#allocation2 + $0xe] sm:$0x2] %vm314, %v1164
  %v1168 = vld [vmem:[#allocation2] sm:$0xff]
  %v1169 = vld [vmem:[#allocation2 + $0x8] sm:$0xff]
  %v1170 = vpack.c.bf16 %v1169, %v1168
  %v1171 = vld [vmem:[%s7] sm:$0xf]
  %v1172 = vld [vmem:[%s7 + $0x4] sm:$0xf]
  %v1173 = vld [vmem:[%s7 + $0x8] sm:$0xf]
  %v1174 = vld [vmem:[%s7 + $0xc] sm:$0xf]
  %v1175 = vld [vmem:[%s8] sm:$0x1]
  %v1177 = vperm.slane %v1175, 0
  %v1183 = vunpack.c.l.b16 %v1171
  %v1184 = vunpack.c.l.b16 %v1172
  %v1185 = vunpack.c.l.b16 %v1173
  %v1186 = vunpack.c.l.b16 %v1174
  %v1187 = vpack.c.b16 %v1184, %v1183
  %v1188 = vpack.c.b16 %v1186, %v1185
  %v1192 = vsel %vm99, %v1170, 0
  %1194 = vmatpush.bf16.msra.mxu0 0
  %1195 = vmatpush.bf16.msra.mxu0 0
  %1196 = vmatpush.bf16.msra.mxu0 0
  %1197 = vmatpush.bf16.msra.mxu0 0
  %1198 = vmatpush.bf16.msra.mxu0 0
  %1199 = vmatpush.bf16.msra.mxu0 0
  %1200 = vmatpush.bf16.msra.mxu0 %v1188
  %1201 = vmatpush.bf16.msra.mxu0 %v1187
  %1202 = vmatmul.bf16.gmra.mxu0 %v1192
  %v1203 = vpop.f32.mrf.mxu0
  %v1204 = vadd.f32 %v1177, %v1203
  %v1205 = vpop.f32.mrf.mxu0
  %v1206 = vadd.f32 %v1177, %v1205
  %1207 = vdwg.mxu0
  %vm1208 = vcmask 15360
  %v1209 = vsel %vm1208, %v1204, -inf
  %1210 = vmax.xlane.f32.xlu0 %v1209
  %v1211 = vpop.xlane.xlu0 %1210
  %v1212 = vsel %vm1208, %v1206, -inf
  %1213 = vmax.xlane.f32.xlu0 %v1212
  %v1214 = vpop.xlane.xlu0 %1213
  %v1215 = vsub.f32 %v1204, %v1211
  %v1216 = vsub.f32 %v1206, %v1214
  %v1217 = vmul.f32 %v1215, 1.442695
  %v1218 = vpow.pop %v1217
  %v1219 = vmul.f32 %v1216, 1.442695
  %v1220 = vpow.pop %v1219
  %v1221 = vsel %vm1208, %v1218, 0.0
  %1222 = vadd.xlane.f32.xlu0 %v1221
  %v1223 = vpop.xlane.xlu0 %1222
  %v1224 = vsel %vm1208, %v1220, 0.0
  %1225 = vadd.xlane.f32.xlu0 %v1224
  %v1226 = vpop.xlane.xlu0 %1225
  %v1227 = vlog2.pop %v1223
  %v1228 = vmul.f32 %v1227, 0.6931472
  %v1229 = vlog2.pop %v1226
  %v1230 = vmul.f32 %v1229, 0.6931472
  %v1231 = vsub.f32 %v1215, %v1228
  %v1232 = vsub.f32 %v1216, %v1230
  %1233 = vst.msk [vmem:[%s9] sm:$0xff] %vm99, %v1168
  %1234 = vst.msk [vmem:[%s9 + $0x8] sm:$0xff] %vm99, %v1169
  %1237 = vrot.lane.b32.xlu0 %v1231, 32
  %v1238 = vpop.permute.xlu0 %1237
  %1239 = vrot.lane.b32.xlu0 %v1232, 32
  %v1240 = vpop.permute.xlu0 %1239
  %vm1243 = vcmask 277760
  %1244 = vst.msk [vmem:[%s9] sm:$0xff] %vm1243, %v1238
  %1245 = vst.msk [vmem:[%s9 + $0x8] sm:$0xff] %vm1243, %v1240
  %vm1246 = vcmask 1047824
  %1247 = vst.msk [vmem:[%s9] sm:$0xff] %vm1246, 0.0
  %1248 = vst.msk [vmem:[%s9 + $0x8] sm:$0xff] %vm1246, 0.0
  // Predicated region
  $region38: #{gru_forward.3} parent=0 // pred_check
    _
  $region39: #{gru_forward.3} parent=0 // pred_check_branch
    %1250 = sbr.rel (0) target = $region41
  $region40: #{gru_forward.3} parent=0 // pred_region
    _
  $region41: #{gru_forward.3} parent=0 // pred_fallthru
    _
  // Predicated region
  $region42: #{gru_forward.3} parent=0 // pred_check
    _
  $region43: #{gru_forward.3} parent=0 // pred_check_branch
    %1252 = sbr.rel (0) target = $region45
  $region44: #{gru_forward.3} parent=0 // pred_region
    _
  $region45: #{gru_forward.3} parent=0 // pred_fallthru
    _

</llo_original>
